<compile_context>
chip_gen: v7x
topology: tpu7x:2x2x1
jax: 0.10.0
libtpu: 0.0.40
codegen_flags: <defaults>
</compile_context>

<pallas_src>
import functools

import jax
import jax.numpy as jnp
from jax import lax
from jax.experimental import pallas as pl
from jax.experimental.pallas import tpu as pltpu

KH = KW = 3      # conv kernel size
PK, PS = 3, 2    # avg-pool kernel / stride (padding = 0)


def _shift3_sum(a, axis):
    """3-tap box sum along `axis` with zero padding of 1 (== conv with ones(3))."""
    n = a.shape[axis]
    zero = jnp.zeros_like(lax.slice_in_dim(a, 0, 1, axis=axis))
    prev = jnp.concatenate([zero, lax.slice_in_dim(a, 0, n - 1, axis=axis)], axis=axis)
    nxt = jnp.concatenate([lax.slice_in_dim(a, 1, n, axis=axis), zero], axis=axis)
    return prev + a + nxt


def convpool_kernel(x_ref, w_ref, b_ref, o_ref, *, H, W):
    # x_ref: (1, HWpad, Cin) flattened image rows; w_ref: (KH*KW*Cin, Cout)
    # b_ref: (1, Cout); o_ref: (1, Po, Pw*Cout)
    Cout = w_ref.shape[-1]
    Ho, Wo = H - KH + 1, W - KW + 1
    Po, Pw = (Ho - PK) // PS + 1, (Wo - PK) // PS + 1
    L = Ho * W                                    # flat conv rows (cols >= Wo are junk)

    xf = x_ref[0].astype(jnp.float32)             # (HWpad, Cin)

    # --- Conv2d(Cin->Cout, 3x3, stride 1, valid, bias): one im2col matmul ----------
    # lhs[p, (dy*KW+dx)*Cin + c] = x_flat[p + dy*W + dx, c]
    lhs = jnp.concatenate(
        [xf[dy * W + dx: dy * W + dx + L, :] for dy in range(KH) for dx in range(KW)],
        axis=-1)                                  # (L, KH*KW*Cin)
    yf = jnp.dot(lhs, w_ref[...], preferred_element_type=jnp.float32) + b_ref[...]

    # Back to spatial layout; drop the W-wraparound junk columns (j >= Wo).
    y = yf.reshape(Ho, W, Cout)[:, :Wo, :]        # (Ho, Wo, Cout)

    # --- "gaussian": depthwise conv with ones(3,3), padding 1 (separable box sum) --
    g = _shift3_sum(_shift3_sum(y, 0), 1)         # (Ho, Wo, Cout)

    # --- AvgPool2d(kernel=3, stride=2, padding=0), vectorized -----------------------
    t = g[0:Ho - 2] + g[1:Ho - 1] + g[2:Ho]                  # row 3-tap, every offset
    v = t[:PS * Po].reshape(Po, PS, Wo, Cout)[:, 0]          # keep even row offsets
    u = v[:, 0:Wo - 2] + v[:, 1:Wo - 1] + v[:, 2:Wo]         # col 3-tap, every offset
    pooled = jnp.concatenate([u[:, PS * j, :] for j in range(Pw)], axis=-1)  # (Po, Pw*Cout)
    o_ref[0] = (pooled * (1.0 / (PK * PK))).astype(o_ref.dtype)


def conv_pool(x, w, b):
    """x: (N, H, W, Cin) f32;  w: (KH, KW, Cin, Cout);  b: (Cout,)."""
    N, H, W, Cin = x.shape
    Cout = w.shape[-1]
    Ho, Wo = H - KH + 1, W - KW + 1
    Po, Pw = (Ho - PK) // PS + 1, (Wo - PK) // PS + 1

    # Flatten spatial dims on the host (free, row-major) + small tail pad so every
    # shifted im2col slice [off, off + Ho*W) stays in bounds (off <= 2*W + 2).
    pad = 8
    HWp = H * W + pad
    x_flat = jnp.pad(x.reshape(N, H * W, Cin), ((0, 0), (0, pad), (0, 0)))
    wf = w.reshape(KH * KW * Cin, Cout).astype(jnp.float32)   # im2col weight (free)
    b2 = b.reshape(1, Cout).astype(jnp.float32)

    out_wide = pl.pallas_call(
        functools.partial(convpool_kernel, H=H, W=W),
        out_shape=jax.ShapeDtypeStruct((N, Po, Pw * Cout), x.dtype),
        grid_spec=pltpu.PrefetchScalarGridSpec(
            num_scalar_prefetch=0,
            grid=(N,),                                        # one image per step
            in_specs=[
                pl.BlockSpec((1, HWp, Cin), lambda n: (n, 0, 0)),
                pl.BlockSpec((KH * KW * Cin, Cout), lambda n: (0, 0)),
                pl.BlockSpec((1, Cout), lambda n: (0, 0)),
            ],
            out_specs=pl.BlockSpec((1, Po, Pw * Cout), lambda n: (n, 0, 0)),
        ),
        compiler_params=pltpu.CompilerParams(
            dimension_semantics=("parallel",)),               # v7x: 1 image / TensorCore
    )(x_flat, wf, b2)
    return out_wide.reshape(N, Po, Pw, Cout)


def conv_pool_ref(x, w, b):
    """Pure-JAX reference matching the PyTorch forward (in NHWC/HWIO layout)."""
    dn = ("NHWC", "HWIO", "NHWC")
    y = lax.conv_general_dilated(x, w, (1, 1), "VALID", dimension_numbers=dn) + b
    cout = y.shape[-1]
    ones = jnp.ones((3, 3, 1, cout), y.dtype)
    g = lax.conv_general_dilated(y, ones, (1, 1), ((1, 1), (1, 1)),
                                 dimension_numbers=dn, feature_group_count=cout)
    s = lax.reduce_window(g, 0.0, lax.add, (1, PK, PK, 1), (1, PS, PS, 1), "VALID")
    return s / float(PK * PK)


if __name__ == "__main__":
    key = jax.random.PRNGKey(0)
    kx, kw, kb = jax.random.split(key, 3)

    # ConvPool(in_channels=16): Conv2d(16 -> 16, 3x3).  Small NHWC input.
    N, H, W, Cin, Cout = 2, 16, 16, 16, 16
    x = jax.random.normal(kx, (N, H, W, Cin), jnp.float32)

    # Deterministic synthetic parameters (PyTorch-style uniform fan-in init).
    fan_in = Cin * KH * KW
    bound = 1.0 / (fan_in ** 0.5)
    w = jax.random.uniform(kw, (KH, KW, Cin, Cout), jnp.float32, -bound, bound)
    b = jax.random.uniform(kb, (Cout,), jnp.float32, -bound, bound)

    out = jax.block_until_ready(conv_pool(x, w, b))
    ref = conv_pool_ref(x, w, b)

    assert out.shape == ref.shape == (N, 6, 6, Cout), (out.shape, ref.shape)
    max_err = float(jnp.max(jnp.abs(out - ref)))
    if max_err > 1e-3:
        raise AssertionError(f"Pallas kernel mismatch vs reference: max_err={max_err}")

    print("KERNEL_OK")
</pallas_src>

<mosaic_0001>
module attributes {stable_mosaic.version = 11 : i64} {
  func.func @convpool_kernel(%arg0: i32, %arg1: memref<1x264x16xf32, #tpu.memory_space<vmem>>, %arg2: memref<144x16xf32, #tpu.memory_space<vmem>>, %arg3: memref<1x16xf32, #tpu.memory_space<vmem>>, %arg4: memref<1x6x96xf32, #tpu.memory_space<vmem>>) attributes {dimension_semantics = [#tpu.dimension_semantics<parallel>], iteration_bounds = array<i64: 2>, scalar_prefetch = 0 : i64, scratch_operands = 0 : i64, tpu.core_type = #tpu.core_type<tc>, window_params = [{transform_indices = @transform_0, window_bounds = array<i64: 1, 264, 16>}, {pipeline_mode = #tpu.pipeline_mode<synchronous>, transform_indices = @transform_1, window_bounds = array<i64: 144, 16>}, {pipeline_mode = #tpu.pipeline_mode<synchronous>, transform_indices = @transform_2, window_bounds = array<i64: 1, 16>}, {transform_indices = @transform_3, window_bounds = array<i64: 1, 6, 96>}]} {
    %c0 = arith.constant 0 : index
    %c0_0 = arith.constant 0 : index
    %c0_1 = arith.constant 0 : index
    %0 = vector.load %arg1[%c0, %c0_0, %c0_1] : memref<1x264x16xf32, #tpu.memory_space<vmem>>, vector<1x264x16xf32>
    %1 = vector.shape_cast %0 : vector<1x264x16xf32> to vector<264x16xf32>
    %2 = vector.extract_strided_slice %1 {offsets = [0, 0], sizes = [224, 16], strides = [1, 1]} : vector<264x16xf32> to vector<224x16xf32>
    %3 = vector.extract_strided_slice %1 {offsets = [1, 0], sizes = [224, 16], strides = [1, 1]} : vector<264x16xf32> to vector<224x16xf32>
    %4 = vector.extract_strided_slice %1 {offsets = [2, 0], sizes = [224, 16], strides = [1, 1]} : vector<264x16xf32> to vector<224x16xf32>
    %5 = vector.extract_strided_slice %1 {offsets = [16, 0], sizes = [224, 16], strides = [1, 1]} : vector<264x16xf32> to vector<224x16xf32>
    %6 = vector.extract_strided_slice %1 {offsets = [17, 0], sizes = [224, 16], strides = [1, 1]} : vector<264x16xf32> to vector<224x16xf32>
    %7 = vector.extract_strided_slice %1 {offsets = [18, 0], sizes = [224, 16], strides = [1, 1]} : vector<264x16xf32> to vector<224x16xf32>
    %8 = vector.extract_strided_slice %1 {offsets = [32, 0], sizes = [224, 16], strides = [1, 1]} : vector<264x16xf32> to vector<224x16xf32>
    %9 = vector.extract_strided_slice %1 {offsets = [33, 0], sizes = [224, 16], strides = [1, 1]} : vector<264x16xf32> to vector<224x16xf32>
    %10 = vector.extract_strided_slice %1 {offsets = [34, 0], sizes = [224, 16], strides = [1, 1]} : vector<264x16xf32> to vector<224x16xf32>
    %11 = tpu.concatenate %2, %3, %4, %5, %6, %7, %8, %9, %10 in 1 : vector<224x16xf32>, vector<224x16xf32>, vector<224x16xf32>, vector<224x16xf32>, vector<224x16xf32>, vector<224x16xf32>, vector<224x16xf32>, vector<224x16xf32>, vector<224x16xf32> -> vector<224x144xf32>
    %c0_2 = arith.constant 0 : index
    %c0_3 = arith.constant 0 : index
    %12 = vector.load %arg2[%c0_2, %c0_3] : memref<144x16xf32, #tpu.memory_space<vmem>>, vector<144x16xf32>
    %cst = arith.constant dense<0.000000e+00> : vector<224x16xf32>
    %13 = tpu.matmul %11, %12, %cst {dimension_numbers = #tpu.dot_dimension_numbers<[1], [0], [0], [1], [0, 0, 1, 1], [], []>} : vector<224x144xf32>, vector<144x16xf32>, vector<224x16xf32> -> vector<224x16xf32>
    %c0_4 = arith.constant 0 : index
    %c0_5 = arith.constant 0 : index
    %14 = vector.load %arg3[%c0_4, %c0_5] : memref<1x16xf32, #tpu.memory_space<vmem>>, vector<1x16xf32>
    %15 = vector.broadcast %14 : vector<1x16xf32> to vector<224x16xf32>
    %16 = arith.addf %13, %15 : vector<224x16xf32>
    %17 = vector.shape_cast %16 : vector<224x16xf32> to vector<14x16x16xf32>
    %18 = vector.extract_strided_slice %17 {offsets = [0, 0, 0], sizes = [14, 14, 16], strides = [1, 1, 1]} : vector<14x16x16xf32> to vector<14x14x16xf32>
    %cst_6 = arith.constant 0.000000e+00 : f32
    %19 = vector.broadcast %cst_6 : f32 to vector<1x14x16xf32>
    %20 = vector.extract_strided_slice %18 {offsets = [0, 0, 0], sizes = [13, 14, 16], strides = [1, 1, 1]} : vector<14x14x16xf32> to vector<13x14x16xf32>
    %21 = tpu.concatenate %19, %20 in 0 : vector<1x14x16xf32>, vector<13x14x16xf32> -> vector<14x14x16xf32>
    %22 = vector.extract_strided_slice %18 {offsets = [1, 0, 0], sizes = [13, 14, 16], strides = [1, 1, 1]} : vector<14x14x16xf32> to vector<13x14x16xf32>
    %23 = tpu.concatenate %22, %19 in 0 : vector<13x14x16xf32>, vector<1x14x16xf32> -> vector<14x14x16xf32>
    %24 = arith.addf %21, %18 : vector<14x14x16xf32>
    %25 = arith.addf %24, %23 : vector<14x14x16xf32>
    %cst_7 = arith.constant 0.000000e+00 : f32
    %26 = vector.broadcast %cst_7 : f32 to vector<14x1x16xf32>
    %27 = vector.extract_strided_slice %25 {offsets = [0, 0, 0], sizes = [14, 13, 16], strides = [1, 1, 1]} : vector<14x14x16xf32> to vector<14x13x16xf32>
    %28 = tpu.concatenate %26, %27 in 1 : vector<14x1x16xf32>, vector<14x13x16xf32> -> vector<14x14x16xf32>
    %29 = vector.extract_strided_slice %25 {offsets = [0, 1, 0], sizes = [14, 13, 16], strides = [1, 1, 1]} : vector<14x14x16xf32> to vector<14x13x16xf32>
    %30 = tpu.concatenate %29, %26 in 1 : vector<14x13x16xf32>, vector<14x1x16xf32> -> vector<14x14x16xf32>
    %31 = arith.addf %28, %25 : vector<14x14x16xf32>
    %32 = arith.addf %31, %30 : vector<14x14x16xf32>
    %33 = vector.extract_strided_slice %32 {offsets = [0, 0, 0], sizes = [12, 14, 16], strides = [1, 1, 1]} : vector<14x14x16xf32> to vector<12x14x16xf32>
    %34 = vector.extract_strided_slice %32 {offsets = [1, 0, 0], sizes = [12, 14, 16], strides = [1, 1, 1]} : vector<14x14x16xf32> to vector<12x14x16xf32>
    %35 = arith.addf %33, %34 : vector<12x14x16xf32>
    %36 = vector.extract_strided_slice %32 {offsets = [2, 0, 0], sizes = [12, 14, 16], strides = [1, 1, 1]} : vector<14x14x16xf32> to vector<12x14x16xf32>
    %37 = arith.addf %35, %36 : vector<12x14x16xf32>
    %38 = vector.shape_cast %37 : vector<12x14x16xf32> to vector<6x2x14x16xf32>
    %39 = vector.extract_strided_slice %38 {offsets = [0, 0, 0, 0], sizes = [6, 1, 14, 16], strides = [1, 1, 1, 1]} : vector<6x2x14x16xf32> to vector<6x1x14x16xf32>
    %40 = vector.shape_cast %39 : vector<6x1x14x16xf32> to vector<6x14x16xf32>
    %41 = vector.extract_strided_slice %40 {offsets = [0, 0, 0], sizes = [6, 12, 16], strides = [1, 1, 1]} : vector<6x14x16xf32> to vector<6x12x16xf32>
    %42 = vector.extract_strided_slice %40 {offsets = [0, 1, 0], sizes = [6, 12, 16], strides = [1, 1, 1]} : vector<6x14x16xf32> to vector<6x12x16xf32>
    %43 = arith.addf %41, %42 : vector<6x12x16xf32>
    %44 = vector.extract_strided_slice %40 {offsets = [0, 2, 0], sizes = [6, 12, 16], strides = [1, 1, 1]} : vector<6x14x16xf32> to vector<6x12x16xf32>
    %45 = arith.addf %43, %44 : vector<6x12x16xf32>
    %46 = vector.extract_strided_slice %45 {offsets = [0, 0, 0], sizes = [6, 1, 16], strides = [1, 1, 1]} : vector<6x12x16xf32> to vector<6x1x16xf32>
    %47 = vector.shape_cast %46 : vector<6x1x16xf32> to vector<6x16xf32>
    %48 = vector.extract_strided_slice %45 {offsets = [0, 2, 0], sizes = [6, 1, 16], strides = [1, 1, 1]} : vector<6x12x16xf32> to vector<6x1x16xf32>
    %49 = vector.shape_cast %48 : vector<6x1x16xf32> to vector<6x16xf32>
    %50 = vector.extract_strided_slice %45 {offsets = [0, 4, 0], sizes = [6, 1, 16], strides = [1, 1, 1]} : vector<6x12x16xf32> to vector<6x1x16xf32>
    %51 = vector.shape_cast %50 : vector<6x1x16xf32> to vector<6x16xf32>
    %52 = vector.extract_strided_slice %45 {offsets = [0, 6, 0], sizes = [6, 1, 16], strides = [1, 1, 1]} : vector<6x12x16xf32> to vector<6x1x16xf32>
    %53 = vector.shape_cast %52 : vector<6x1x16xf32> to vector<6x16xf32>
    %54 = vector.extract_strided_slice %45 {offsets = [0, 8, 0], sizes = [6, 1, 16], strides = [1, 1, 1]} : vector<6x12x16xf32> to vector<6x1x16xf32>
    %55 = vector.shape_cast %54 : vector<6x1x16xf32> to vector<6x16xf32>
    %56 = vector.extract_strided_slice %45 {offsets = [0, 10, 0], sizes = [6, 1, 16], strides = [1, 1, 1]} : vector<6x12x16xf32> to vector<6x1x16xf32>
    %57 = vector.shape_cast %56 : vector<6x1x16xf32> to vector<6x16xf32>
    %58 = tpu.concatenate %47, %49, %51, %53, %55, %57 in 1 : vector<6x16xf32>, vector<6x16xf32>, vector<6x16xf32>, vector<6x16xf32>, vector<6x16xf32>, vector<6x16xf32> -> vector<6x96xf32>
    %cst_8 = arith.constant 0.111111112 : f32
    %59 = vector.broadcast %cst_8 : f32 to vector<6x96xf32>
    %60 = arith.mulf %58, %59 : vector<6x96xf32>
    %c0_9 = arith.constant 0 : index
    %c0_10 = arith.constant 0 : index
    %c0_11 = arith.constant 0 : index
    %61 = vector.load %arg4[%c0_9, %c0_10, %c0_11] : memref<1x6x96xf32, #tpu.memory_space<vmem>>, vector<1x6x96xf32>
    %62 = vector.shape_cast %61 : vector<1x6x96xf32> to vector<6x96xf32>
    %63 = vector.shape_cast %60 : vector<6x96xf32> to vector<1x6x96xf32>
    tpu.vector_store %arg4[%c0_9, %c0_10, %c0_11], %63 {strides = array<i32>} : memref<1x6x96xf32, #tpu.memory_space<vmem>>, vector<1x6x96xf32>,
    return
  }
  func.func @transform_0(%arg0: i32) -> (i32, i32, i32) {
    %c0_i32 = arith.constant 0 : i32
    %c0_i32_0 = arith.constant 0 : i32
    %c0_i32_1 = arith.constant 0 : i32
    return %arg0, %c0_i32, %c0_i32_0 : i32, i32, i32
  }
  func.func @transform_1(%arg0: i32) -> (i32, i32) {
    %c0_i32 = arith.constant 0 : i32
    %c0_i32_0 = arith.constant 0 : i32
    %c0_i32_1 = arith.constant 0 : i32
    return %c0_i32, %c0_i32_0 : i32, i32
  }
  func.func @transform_2(%arg0: i32) -> (i32, i32) {
    %c0_i32 = arith.constant 0 : i32
    %c0_i32_0 = arith.constant 0 : i32
    %c0_i32_1 = arith.constant 0 : i32
    return %c0_i32, %c0_i32_0 : i32, i32
  }
  func.func @transform_3(%arg0: i32) -> (i32, i32, i32) {
    %c0_i32 = arith.constant 0 : i32
    %c0_i32_0 = arith.constant 0 : i32
    %c0_i32_1 = arith.constant 0 : i32
    return %arg0, %c0_i32, %c0_i32_0 : i32, i32, i32
  }
}

</mosaic_0001>

<llo_original>
// kernel: tpu_custom_call.1
$region0: #{tpu_custom_call.1}
  #allocation0 [shape = 'u32[]', space=smem, size = 0x4, offset = 0x4, fixed_abs, tag = 'smem constant byte address 0x4 - core index']
  #allocation1 [shape = 'u32[144,128]{1,0:T(1,128)}', space=vmem, size = 0x12000, scoped, tag = 'internal scratch']
  %s0 = inlined_call_operand.vmem [shape: f32[2,264,16], index: 0, kind: input, shape index: {}]
  %s1 = inlined_call_operand.vmem [shape: f32[144,16], index: 1, kind: input, shape index: {}]
  %s2 = inlined_call_operand.vmem [shape: f32[1,16], index: 2, kind: input, shape index: {}]
  %s3 = inlined_call_operand.vmem [shape: f32[2,6,96], index: 3, kind: output, shape index: {}]
  %s4 = sld [smem:[#allocation0]]
  $region45: #{tpu_custom_call.1} parent=0
    _
  %s6 = ssub.s32 1, %s4
  %s7 = scalar_select 0, %s6, %s4
  loop: start=0, step=1, limit=4
  $region2: #{tpu_custom_call.1} parent=0 // loop_pre_header
    _
  $region3: #{tpu_custom_call.1} parent=0 // loop_header
    %s9 = sphi 0, %s13
    %p10 = scmp.ge.s32.totalorder %s9, 4
    %s19 = sphi 0, %s21
    %s22 = sphi 0, %s19
    %s23 = sphi 0, %s22
    %s39 = sphi 0, %s23
    %s43 = sphi 0, %s43
    %s45 = sphi 0, %s43
    %s46 = sphi 0, %s45
    %s60 = sphi 0, %s46
    %s64 = sphi 0, %s64
    %s66 = sphi 0, %s64
    %s67 = sphi 0, %s66
    %s81 = sphi 0, %s67
    %s87 = sphi 0, %s89
    %s90 = sphi 0, %s87
    %s91 = sphi 0, %s90
    %s107 = sphi 0, %s91
  $region4: #{tpu_custom_call.1} parent=0 // loop_header_branch
    %12 = sbr.rel (%p10) target = $region8
  $region5: #{tpu_custom_call.1} parent=0 // loop_body
    %s14 = ssub.s32 %s9, 1
    %s15 = ssub.s32 %s9, 2
    %s16 = sadd.s32 %s9, 1
    %s17 = ssub.s32 %s9, %s16
    %p18 = scmp.eq.s32.totalorder %s17, 0
    %s20 = sadd.s32 %s19, 1
    %s21 = scalar_select %p18, %s19, %s20
    %p24 = pneg %p18
    %p25 = scmp.eq.s32.totalorder %s9, 1
    %p26 = por %p24, %p25
    %p27 = scmp.ne.s32.totalorder %s19, %s22
    %p28 = scmp.eq.s32.totalorder %s9, 0
    %p29 = por %p27, %p28
    %p30 = scmp.ne.s32.totalorder %s19, %s22
    %p31 = scmp.eq.s32.totalorder %s14, 1
    %p32 = por %p30, %p31
    %p33 = scmp.ne.s32.totalorder %s22, %s23
    %p34 = scmp.eq.s32.totalorder %s14, 0
    %p35 = por %p33, %p34
    %p36 = scmp.ne.s32.totalorder %s22, %s23
    %p37 = scmp.eq.s32.totalorder %s15, 1
    %p38 = por %p36, %p37
    %p40 = scmp.ne.s32.totalorder %s23, %s39
    %p41 = scmp.eq.s32.totalorder %s15, 0
    %p42 = por %p40, %p41
    %s44 = sadd.s32 %s43, 1
    %p47 = scmp.eq.s32.totalorder %s9, 1
    %p48 = scmp.ne.s32.totalorder %s43, %s45
    %p49 = scmp.eq.s32.totalorder %s9, 0
    %p50 = por %p48, %p49
    %p51 = scmp.ne.s32.totalorder %s43, %s45
    %p52 = scmp.eq.s32.totalorder %s14, 1
    %p53 = por %p51, %p52
    %p54 = scmp.ne.s32.totalorder %s45, %s46
    %p55 = scmp.eq.s32.totalorder %s14, 0
    %p56 = por %p54, %p55
    %p57 = scmp.ne.s32.totalorder %s45, %s46
    %p58 = scmp.eq.s32.totalorder %s15, 1
    %p59 = por %p57, %p58
    %p61 = scmp.ne.s32.totalorder %s46, %s60
    %p62 = scmp.eq.s32.totalorder %s15, 0
    %p63 = por %p61, %p62
    %s65 = sadd.s32 %s64, 1
    %p68 = scmp.eq.s32.totalorder %s9, 1
    %p69 = scmp.ne.s32.totalorder %s64, %s66
    %p70 = scmp.eq.s32.totalorder %s9, 0
    %p71 = por %p69, %p70
    %p72 = scmp.ne.s32.totalorder %s64, %s66
    %p73 = scmp.eq.s32.totalorder %s14, 1
    %p74 = por %p72, %p73
    %p75 = scmp.ne.s32.totalorder %s66, %s67
    %p76 = scmp.eq.s32.totalorder %s14, 0
    %p77 = por %p75, %p76
    %p78 = scmp.ne.s32.totalorder %s66, %s67
    %p79 = scmp.eq.s32.totalorder %s15, 1
    %p80 = por %p78, %p79
    %p82 = scmp.ne.s32.totalorder %s67, %s81
    %p83 = scmp.eq.s32.totalorder %s15, 0
    %p84 = por %p82, %p83
    %s85 = ssub.s32 %s9, %s16
    %p86 = scmp.eq.s32.totalorder %s85, 0
    %s88 = sadd.s32 %s87, 1
    %s89 = scalar_select %p86, %s87, %s88
    %p92 = pneg %p86
    %p93 = scmp.eq.s32.totalorder %s9, 1
    %p94 = por %p92, %p93
    %p95 = scmp.ne.s32.totalorder %s87, %s90
    %p96 = scmp.eq.s32.totalorder %s9, 0
    %p97 = por %p95, %p96
    %p98 = scmp.ne.s32.totalorder %s87, %s90
    %p99 = scmp.eq.s32.totalorder %s14, 1
    %p100 = por %p98, %p99
    %p101 = scmp.ne.s32.totalorder %s90, %s91
    %p102 = scmp.eq.s32.totalorder %s14, 0
    %p103 = por %p101, %p102
    %p104 = scmp.ne.s32.totalorder %s90, %s91
    %p105 = scmp.eq.s32.totalorder %s15, 1
    %p106 = por %p104, %p105
    %p108 = scmp.ne.s32.totalorder %s91, %s107
    %p109 = scmp.eq.s32.totalorder %s15, 0
    %p110 = por %p108, %p109
    %p111 = scmp.le.s32.totalorder 1, %s9
    %p112 = scmp.lt.s32.totalorder %s9, 3
    %p113 = pnand %p111, %p112
    %p114 = pneg %p113
    // Predicated region
    $region9: #{tpu_custom_call.1} parent=5 // pred_check
      _
    $region10: #{tpu_custom_call.1} parent=5 // pred_check_branch
      %116 = sbr.rel (%p113) target = $region12
    $region11: #{tpu_custom_call.1} parent=5 // pred_region
      %s117 = ssub.s32 %s9, 1
      // Predicated region
      $region13: #{tpu_custom_call.1} parent=11 // pred_check
        %p118 = pneg %p56
      $region14: #{tpu_custom_call.1} parent=11 // pred_check_branch
        %120 = sbr.rel (%p118) target = $region16
      $region15: #{tpu_custom_call.1} parent=11 // pred_region
        _
      $region16: #{tpu_custom_call.1} parent=11 // pred_fallthru
        _
      // Predicated region
      $region17: #{tpu_custom_call.1} parent=11 // pred_check
        %p121 = pneg %p77
      $region18: #{tpu_custom_call.1} parent=11 // pred_check_branch
        %123 = sbr.rel (%p121) target = $region20
      $region19: #{tpu_custom_call.1} parent=11 // pred_region
        _
      $region20: #{tpu_custom_call.1} parent=11 // pred_fallthru
        _
    $region12: #{tpu_custom_call.1} parent=5 // pred_fallthru
      _
    %p124 = scmp.lt.s32.totalorder %s9, 2
    // Predicated region
    $region21: #{tpu_custom_call.1} parent=5 // pred_check
      %p125 = pneg %p124
    $region22: #{tpu_custom_call.1} parent=5 // pred_check_branch
      %127 = sbr.rel (%p125) target = $region24
    $region23: #{tpu_custom_call.1} parent=5 // pred_region
      // Predicated region
      $region25: #{tpu_custom_call.1} parent=23 // pred_check
        %p128 = pneg %p29
      $region26: #{tpu_custom_call.1} parent=23 // pred_check_branch
        %130 = sbr.rel (%p128) target = $region28
      $region27: #{tpu_custom_call.1} parent=23 // pred_region
        %p131 = scmp.lt.s32.totalorder %s9, 1
        %s132 = scalar_select %p131, %s9, 1
        %s133 = smul.addr %s132, 33
        %s134 = smul.addr %s133, 8
        %s135 = scalar_lea.vmem %s0, %s134
      $region28: #{tpu_custom_call.1} parent=23 // pred_fallthru
        _
    $region24: #{tpu_custom_call.1} parent=5 // pred_fallthru
      _
    %p136 = scmp.le.s32.totalorder 1, %s9
    %p137 = scmp.lt.s32.totalorder %s9, 3
    %p138 = pnand %p136, %p137
    %p139 = pneg %p138
    // Predicated region
    $region29: #{tpu_custom_call.1} parent=5 // pred_check
      _
    $region30: #{tpu_custom_call.1} parent=5 // pred_check_branch
      %141 = sbr.rel (%p138) target = $region32
    $region31: #{tpu_custom_call.1} parent=5 // pred_region
      %s142 = ssub.s32 %s9, 1
      %p143 = scmp.lt.s32.totalorder %s14, 1
      %s144 = scalar_select %p143, %s14, 1
      %s145 = smul.addr %s144, 33
      %s146 = smul.addr %s145, 8
      %s147 = scalar_lea.vmem %s0, %s146
      %p148 = pneg %p35
      %p149 = pneg %p32
      %p150 = pneg %p56
      %p151 = pneg %p53
      %p152 = pneg %p77
      %p153 = pneg %p74
      %p154 = pneg %p103
      %p155 = pneg %p100
      %p156 = scmp.lt.s32.totalorder %s14, 1
      %s157 = scalar_select %p156, %s14, 1
      %s158 = smul.addr %s157, 8
      %s159 = scalar_lea.vmem %s3, %s158
      %p160 = scmp.lt.s32.totalorder %s14, 1
      %s161 = scalar_select %p160, %s14, 1
      %s162 = smul.addr %s161, 33
      %s163 = smul.addr %s162, 8
      %s164 = scalar_lea.vmem %s0, %s163
      %p165 = scmp.lt.s32.totalorder %s14, 1
      %s166 = scalar_select %p165, %s14, 1
      %s167 = smul.addr %s166, 8
      %s168 = scalar_lea.vmem %s3, %s167
      %v169 = vld [vmem:[%s164] sm:$0xff]
      %v170 = vld [vmem:[%s164 + $0x8] sm:$0xff]
      %v171 = vld [vmem:[%s164 + $0x10] sm:$0xff]
      %v172 = vld [vmem:[%s164 + $0x18] sm:$0xff]
      %v173 = vld [vmem:[%s164 + $0x20] sm:$0xff]
      %v174 = vld [vmem:[%s164 + $0x28] sm:$0xff]
      %v175 = vld [vmem:[%s164 + $0x30] sm:$0xff]
      %v176 = vld [vmem:[%s164 + $0x38] sm:$0xff]
      %v177 = vld [vmem:[%s164 + $0x40] sm:$0xff]
      %v178 = vld [vmem:[%s164 + $0x48] sm:$0xff]
      %v179 = vld [vmem:[%s164 + $0x50] sm:$0xff]
      %v180 = vld [vmem:[%s164 + $0x58] sm:$0xff]
      %v181 = vld [vmem:[%s164 + $0x60] sm:$0xff]
      %v182 = vld [vmem:[%s164 + $0x68] sm:$0xff]
      %v183 = vld [vmem:[%s164 + $0x70] sm:$0xff]
      %v184 = vld [vmem:[%s164 + $0x78] sm:$0xff]
      %v185 = vld [vmem:[%s164 + $0x80] sm:$0xff]
      %v186 = vld [vmem:[%s164 + $0x88] sm:$0xff]
      %v187 = vld [vmem:[%s164 + $0x90] sm:$0xff]
      %v188 = vld [vmem:[%s164 + $0x98] sm:$0xff]
      %v189 = vld [vmem:[%s164 + $0xa0] sm:$0xff]
      %v190 = vld [vmem:[%s164 + $0xa8] sm:$0xff]
      %v191 = vld [vmem:[%s164 + $0xb0] sm:$0xff]
      %v192 = vld [vmem:[%s164 + $0xb8] sm:$0xff]
      %v193 = vld [vmem:[%s164 + $0xc0] sm:$0xff]
      %v194 = vld [vmem:[%s164 + $0xc8] sm:$0xff]
      %v195 = vld [vmem:[%s164 + $0xd0] sm:$0xff]
      %v196 = vld [vmem:[%s164 + $0xd8] sm:$0xff]
      %v197 = vld [vmem:[%s164 + $0xe0] sm:$0xff]
      %v198 = vld [vmem:[%s164 + $0xe8] sm:$0xff]
      %v199 = vld [vmem:[%s164 + $0xf0] sm:$0xff]
      %v200 = vld [vmem:[%s164 + $0xf8] sm:$0xff]
      %v201 = vld [vmem:[%s164 + $0x100] sm:$0xff]
      %vm231 = vcmask 1046528
      %v232 = vrot.slane %v169, 1
      %v233 = vrot.slane %v170, 1
      %v234 = vsel %vm231, %v232, %v233
      %v235 = vrot.slane %v171, 1
      %v236 = vsel %vm231, %v233, %v235
      %v237 = vrot.slane %v172, 1
      %v238 = vsel %vm231, %v235, %v237
      %v239 = vrot.slane %v173, 1
      %v240 = vsel %vm231, %v237, %v239
      %v241 = vrot.slane %v174, 1
      %v242 = vsel %vm231, %v239, %v241
      %v243 = vrot.slane %v175, 1
      %v244 = vsel %vm231, %v241, %v243
      %v245 = vrot.slane %v176, 1
      %v246 = vsel %vm231, %v243, %v245
      %v247 = vrot.slane %v177, 1
      %v248 = vsel %vm231, %v245, %v247
      %v249 = vrot.slane %v178, 1
      %v250 = vsel %vm231, %v247, %v249
      %v251 = vrot.slane %v179, 1
      %v252 = vsel %vm231, %v249, %v251
      %v253 = vrot.slane %v180, 1
      %v254 = vsel %vm231, %v251, %v253
      %v255 = vrot.slane %v181, 1
      %v256 = vsel %vm231, %v253, %v255
      %v257 = vrot.slane %v182, 1
      %v258 = vsel %vm231, %v255, %v257
      %v259 = vrot.slane %v183, 1
      %v260 = vsel %vm231, %v257, %v259
      %v261 = vrot.slane %v184, 1
      %v262 = vsel %vm231, %v259, %v261
      %v263 = vrot.slane %v185, 1
      %v264 = vsel %vm231, %v261, %v263
      %v265 = vrot.slane %v186, 1
      %v266 = vsel %vm231, %v263, %v265
      %v267 = vrot.slane %v187, 1
      %v268 = vsel %vm231, %v265, %v267
      %v269 = vrot.slane %v188, 1
      %v270 = vsel %vm231, %v267, %v269
      %v271 = vrot.slane %v189, 1
      %v272 = vsel %vm231, %v269, %v271
      %v273 = vrot.slane %v190, 1
      %v274 = vsel %vm231, %v271, %v273
      %v275 = vrot.slane %v191, 1
      %v276 = vsel %vm231, %v273, %v275
      %v277 = vrot.slane %v192, 1
      %v278 = vsel %vm231, %v275, %v277
      %v279 = vrot.slane %v193, 1
      %v280 = vsel %vm231, %v277, %v279
      %v281 = vrot.slane %v194, 1
      %v282 = vsel %vm231, %v279, %v281
      %v283 = vrot.slane %v195, 1
      %v284 = vsel %vm231, %v281, %v283
      %v285 = vrot.slane %v196, 1
      %v286 = vsel %vm231, %v283, %v285
      %v287 = vrot.slane %v197, 1
      %v288 = vsel %vm231, %v285, %v287
      %289 = vrot.lane.b32.xlu0 %v234, 16
      %v290 = vpop.permute.xlu0 %289
      %291 = vrot.lane.b32.xlu0 %v236, 16
      %v292 = vpop.permute.xlu0 %291
      %293 = vrot.lane.b32.xlu0 %v238, 16
      %v294 = vpop.permute.xlu0 %293
      %295 = vrot.lane.b32.xlu0 %v240, 16
      %v296 = vpop.permute.xlu0 %295
      %297 = vrot.lane.b32.xlu0 %v242, 16
      %v298 = vpop.permute.xlu0 %297
      %299 = vrot.lane.b32.xlu0 %v244, 16
      %v300 = vpop.permute.xlu0 %299
      %301 = vrot.lane.b32.xlu0 %v246, 16
      %v302 = vpop.permute.xlu0 %301
      %303 = vrot.lane.b32.xlu0 %v248, 16
      %v304 = vpop.permute.xlu0 %303
      %305 = vrot.lane.b32.xlu0 %v250, 16
      %v306 = vpop.permute.xlu0 %305
      %307 = vrot.lane.b32.xlu0 %v252, 16
      %v308 = vpop.permute.xlu0 %307
      %309 = vrot.lane.b32.xlu0 %v254, 16
      %v310 = vpop.permute.xlu0 %309
      %311 = vrot.lane.b32.xlu0 %v256, 16
      %v312 = vpop.permute.xlu0 %311
      %313 = vrot.lane.b32.xlu0 %v258, 16
      %v314 = vpop.permute.xlu0 %313
      %315 = vrot.lane.b32.xlu0 %v260, 16
      %v316 = vpop.permute.xlu0 %315
      %317 = vrot.lane.b32.xlu0 %v262, 16
      %v318 = vpop.permute.xlu0 %317
      %319 = vrot.lane.b32.xlu0 %v264, 16
      %v320 = vpop.permute.xlu0 %319
      %321 = vrot.lane.b32.xlu0 %v266, 16
      %v322 = vpop.permute.xlu0 %321
      %323 = vrot.lane.b32.xlu0 %v268, 16
      %v324 = vpop.permute.xlu0 %323
      %325 = vrot.lane.b32.xlu0 %v270, 16
      %v326 = vpop.permute.xlu0 %325
      %327 = vrot.lane.b32.xlu0 %v272, 16
      %v328 = vpop.permute.xlu0 %327
      %329 = vrot.lane.b32.xlu0 %v274, 16
      %v330 = vpop.permute.xlu0 %329
      %331 = vrot.lane.b32.xlu0 %v276, 16
      %v332 = vpop.permute.xlu0 %331
      %333 = vrot.lane.b32.xlu0 %v278, 16
      %v334 = vpop.permute.xlu0 %333
      %335 = vrot.lane.b32.xlu0 %v280, 16
      %v336 = vpop.permute.xlu0 %335
      %337 = vrot.lane.b32.xlu0 %v282, 16
      %v338 = vpop.permute.xlu0 %337
      %339 = vrot.lane.b32.xlu0 %v284, 16
      %v340 = vpop.permute.xlu0 %339
      %341 = vrot.lane.b32.xlu0 %v286, 16
      %v342 = vpop.permute.xlu0 %341
      %343 = vrot.lane.b32.xlu0 %v288, 16
      %v344 = vpop.permute.xlu0 %343
      %vm373 = vcmask 1045504
      %v374 = vrot.slane %v169, 2
      %v375 = vrot.slane %v170, 2
      %v376 = vsel %vm373, %v374, %v375
      %v377 = vrot.slane %v171, 2
      %v378 = vsel %vm373, %v375, %v377
      %v379 = vrot.slane %v172, 2
      %v380 = vsel %vm373, %v377, %v379
      %v381 = vrot.slane %v173, 2
      %v382 = vsel %vm373, %v379, %v381
      %v383 = vrot.slane %v174, 2
      %v384 = vsel %vm373, %v381, %v383
      %v385 = vrot.slane %v175, 2
      %v386 = vsel %vm373, %v383, %v385
      %v387 = vrot.slane %v176, 2
      %v388 = vsel %vm373, %v385, %v387
      %v389 = vrot.slane %v177, 2
      %v390 = vsel %vm373, %v387, %v389
      %v391 = vrot.slane %v178, 2
      %v392 = vsel %vm373, %v389, %v391
      %v393 = vrot.slane %v179, 2
      %v394 = vsel %vm373, %v391, %v393
      %v395 = vrot.slane %v180, 2
      %v396 = vsel %vm373, %v393, %v395
      %v397 = vrot.slane %v181, 2
      %v398 = vsel %vm373, %v395, %v397
      %v399 = vrot.slane %v182, 2
      %v400 = vsel %vm373, %v397, %v399
      %v401 = vrot.slane %v183, 2
      %v402 = vsel %vm373, %v399, %v401
      %v403 = vrot.slane %v184, 2
      %v404 = vsel %vm373, %v401, %v403
      %v405 = vrot.slane %v185, 2
      %v406 = vsel %vm373, %v403, %v405
      %v407 = vrot.slane %v186, 2
      %v408 = vsel %vm373, %v405, %v407
      %v409 = vrot.slane %v187, 2
      %v410 = vsel %vm373, %v407, %v409
      %v411 = vrot.slane %v188, 2
      %v412 = vsel %vm373, %v409, %v411
      %v413 = vrot.slane %v189, 2
      %v414 = vsel %vm373, %v411, %v413
      %v415 = vrot.slane %v190, 2
      %v416 = vsel %vm373, %v413, %v415
      %v417 = vrot.slane %v191, 2
      %v418 = vsel %vm373, %v415, %v417
      %v419 = vrot.slane %v192, 2
      %v420 = vsel %vm373, %v417, %v419
      %v421 = vrot.slane %v193, 2
      %v422 = vsel %vm373, %v419, %v421
      %v423 = vrot.slane %v194, 2
      %v424 = vsel %vm373, %v421, %v423
      %v425 = vrot.slane %v195, 2
      %v426 = vsel %vm373, %v423, %v425
      %v427 = vrot.slane %v196, 2
      %v428 = vsel %vm373, %v425, %v427
      %v429 = vrot.slane %v197, 2
      %v430 = vsel %vm373, %v427, %v429
      %431 = vrot.lane.b32.xlu0 %v376, 32
      %v432 = vpop.permute.xlu0 %431
      %433 = vrot.lane.b32.xlu0 %v378, 32
      %v434 = vpop.permute.xlu0 %433
      %435 = vrot.lane.b32.xlu0 %v380, 32
      %v436 = vpop.permute.xlu0 %435
      %437 = vrot.lane.b32.xlu0 %v382, 32
      %v438 = vpop.permute.xlu0 %437
      %439 = vrot.lane.b32.xlu0 %v384, 32
      %v440 = vpop.permute.xlu0 %439
      %441 = vrot.lane.b32.xlu0 %v386, 32
      %v442 = vpop.permute.xlu0 %441
      %443 = vrot.lane.b32.xlu0 %v388, 32
      %v444 = vpop.permute.xlu0 %443
      %445 = vrot.lane.b32.xlu0 %v390, 32
      %v446 = vpop.permute.xlu0 %445
      %447 = vrot.lane.b32.xlu0 %v392, 32
      %v448 = vpop.permute.xlu0 %447
      %449 = vrot.lane.b32.xlu0 %v394, 32
      %v450 = vpop.permute.xlu0 %449
      %451 = vrot.lane.b32.xlu0 %v396, 32
      %v452 = vpop.permute.xlu0 %451
      %453 = vrot.lane.b32.xlu0 %v398, 32
      %v454 = vpop.permute.xlu0 %453
      %455 = vrot.lane.b32.xlu0 %v400, 32
      %v456 = vpop.permute.xlu0 %455
      %457 = vrot.lane.b32.xlu0 %v402, 32
      %v458 = vpop.permute.xlu0 %457
      %459 = vrot.lane.b32.xlu0 %v404, 32
      %v460 = vpop.permute.xlu0 %459
      %461 = vrot.lane.b32.xlu0 %v406, 32
      %v462 = vpop.permute.xlu0 %461
      %463 = vrot.lane.b32.xlu0 %v408, 32
      %v464 = vpop.permute.xlu0 %463
      %465 = vrot.lane.b32.xlu0 %v410, 32
      %v466 = vpop.permute.xlu0 %465
      %467 = vrot.lane.b32.xlu0 %v412, 32
      %v468 = vpop.permute.xlu0 %467
      %469 = vrot.lane.b32.xlu0 %v414, 32
      %v470 = vpop.permute.xlu0 %469
      %471 = vrot.lane.b32.xlu0 %v416, 32
      %v472 = vpop.permute.xlu0 %471
      %473 = vrot.lane.b32.xlu0 %v418, 32
      %v474 = vpop.permute.xlu0 %473
      %475 = vrot.lane.b32.xlu0 %v420, 32
      %v476 = vpop.permute.xlu0 %475
      %477 = vrot.lane.b32.xlu0 %v422, 32
      %v478 = vpop.permute.xlu0 %477
      %479 = vrot.lane.b32.xlu0 %v424, 32
      %v480 = vpop.permute.xlu0 %479
      %481 = vrot.lane.b32.xlu0 %v426, 32
      %v482 = vpop.permute.xlu0 %481
      %483 = vrot.lane.b32.xlu0 %v428, 32
      %v484 = vpop.permute.xlu0 %483
      %485 = vrot.lane.b32.xlu0 %v430, 32
      %v486 = vpop.permute.xlu0 %485
      %516 = vrot.lane.b32.xlu0 %v171, 48
      %v517 = vpop.permute.xlu0 %516
      %518 = vrot.lane.b32.xlu0 %v172, 48
      %v519 = vpop.permute.xlu0 %518
      %520 = vrot.lane.b32.xlu0 %v173, 48
      %v521 = vpop.permute.xlu0 %520
      %522 = vrot.lane.b32.xlu0 %v174, 48
      %v523 = vpop.permute.xlu0 %522
      %524 = vrot.lane.b32.xlu0 %v175, 48
      %v525 = vpop.permute.xlu0 %524
      %526 = vrot.lane.b32.xlu0 %v176, 48
      %v527 = vpop.permute.xlu0 %526
      %528 = vrot.lane.b32.xlu0 %v177, 48
      %v529 = vpop.permute.xlu0 %528
      %530 = vrot.lane.b32.xlu0 %v178, 48
      %v531 = vpop.permute.xlu0 %530
      %532 = vrot.lane.b32.xlu0 %v179, 48
      %v533 = vpop.permute.xlu0 %532
      %534 = vrot.lane.b32.xlu0 %v180, 48
      %v535 = vpop.permute.xlu0 %534
      %536 = vrot.lane.b32.xlu0 %v181, 48
      %v537 = vpop.permute.xlu0 %536
      %538 = vrot.lane.b32.xlu0 %v182, 48
      %v539 = vpop.permute.xlu0 %538
      %540 = vrot.lane.b32.xlu0 %v183, 48
      %v541 = vpop.permute.xlu0 %540
      %542 = vrot.lane.b32.xlu0 %v184, 48
      %v543 = vpop.permute.xlu0 %542
      %544 = vrot.lane.b32.xlu0 %v185, 48
      %v545 = vpop.permute.xlu0 %544
      %546 = vrot.lane.b32.xlu0 %v186, 48
      %v547 = vpop.permute.xlu0 %546
      %548 = vrot.lane.b32.xlu0 %v187, 48
      %v549 = vpop.permute.xlu0 %548
      %550 = vrot.lane.b32.xlu0 %v188, 48
      %v551 = vpop.permute.xlu0 %550
      %552 = vrot.lane.b32.xlu0 %v189, 48
      %v553 = vpop.permute.xlu0 %552
      %554 = vrot.lane.b32.xlu0 %v190, 48
      %v555 = vpop.permute.xlu0 %554
      %556 = vrot.lane.b32.xlu0 %v191, 48
      %v557 = vpop.permute.xlu0 %556
      %558 = vrot.lane.b32.xlu0 %v192, 48
      %v559 = vpop.permute.xlu0 %558
      %560 = vrot.lane.b32.xlu0 %v193, 48
      %v561 = vpop.permute.xlu0 %560
      %562 = vrot.lane.b32.xlu0 %v194, 48
      %v563 = vpop.permute.xlu0 %562
      %564 = vrot.lane.b32.xlu0 %v195, 48
      %v565 = vpop.permute.xlu0 %564
      %566 = vrot.lane.b32.xlu0 %v196, 48
      %v567 = vpop.permute.xlu0 %566
      %568 = vrot.lane.b32.xlu0 %v197, 48
      %v569 = vpop.permute.xlu0 %568
      %570 = vrot.lane.b32.xlu0 %v198, 48
      %v571 = vpop.permute.xlu0 %570
      %v601 = vrot.slane %v198, 1
      %v602 = vsel %vm231, %v287, %v601
      %v603 = vrot.slane %v199, 1
      %v604 = vsel %vm231, %v601, %v603
      %605 = vrot.lane.b32.xlu0 %v238, 64
      %v606 = vpop.permute.xlu0 %605
      %607 = vrot.lane.b32.xlu0 %v240, 64
      %v608 = vpop.permute.xlu0 %607
      %609 = vrot.lane.b32.xlu0 %v242, 64
      %v610 = vpop.permute.xlu0 %609
      %611 = vrot.lane.b32.xlu0 %v244, 64
      %v612 = vpop.permute.xlu0 %611
      %613 = vrot.lane.b32.xlu0 %v246, 64
      %v614 = vpop.permute.xlu0 %613
      %615 = vrot.lane.b32.xlu0 %v248, 64
      %v616 = vpop.permute.xlu0 %615
      %617 = vrot.lane.b32.xlu0 %v250, 64
      %v618 = vpop.permute.xlu0 %617
      %619 = vrot.lane.b32.xlu0 %v252, 64
      %v620 = vpop.permute.xlu0 %619
      %621 = vrot.lane.b32.xlu0 %v254, 64
      %v622 = vpop.permute.xlu0 %621
      %623 = vrot.lane.b32.xlu0 %v256, 64
      %v624 = vpop.permute.xlu0 %623
      %625 = vrot.lane.b32.xlu0 %v258, 64
      %v626 = vpop.permute.xlu0 %625
      %627 = vrot.lane.b32.xlu0 %v260, 64
      %v628 = vpop.permute.xlu0 %627
      %629 = vrot.lane.b32.xlu0 %v262, 64
      %v630 = vpop.permute.xlu0 %629
      %631 = vrot.lane.b32.xlu0 %v264, 64
      %v632 = vpop.permute.xlu0 %631
      %633 = vrot.lane.b32.xlu0 %v266, 64
      %v634 = vpop.permute.xlu0 %633
      %635 = vrot.lane.b32.xlu0 %v268, 64
      %v636 = vpop.permute.xlu0 %635
      %637 = vrot.lane.b32.xlu0 %v270, 64
      %v638 = vpop.permute.xlu0 %637
      %639 = vrot.lane.b32.xlu0 %v272, 64
      %v640 = vpop.permute.xlu0 %639
      %641 = vrot.lane.b32.xlu0 %v274, 64
      %v642 = vpop.permute.xlu0 %641
      %643 = vrot.lane.b32.xlu0 %v276, 64
      %v644 = vpop.permute.xlu0 %643
      %645 = vrot.lane.b32.xlu0 %v278, 64
      %v646 = vpop.permute.xlu0 %645
      %647 = vrot.lane.b32.xlu0 %v280, 64
      %v648 = vpop.permute.xlu0 %647
      %649 = vrot.lane.b32.xlu0 %v282, 64
      %v650 = vpop.permute.xlu0 %649
      %651 = vrot.lane.b32.xlu0 %v284, 64
      %v652 = vpop.permute.xlu0 %651
      %653 = vrot.lane.b32.xlu0 %v286, 64
      %v654 = vpop.permute.xlu0 %653
      %655 = vrot.lane.b32.xlu0 %v288, 64
      %v656 = vpop.permute.xlu0 %655
      %657 = vrot.lane.b32.xlu0 %v602, 64
      %v658 = vpop.permute.xlu0 %657
      %659 = vrot.lane.b32.xlu0 %v604, 64
      %v660 = vpop.permute.xlu0 %659
      %v689 = vrot.slane %v198, 2
      %v690 = vsel %vm373, %v429, %v689
      %v691 = vrot.slane %v199, 2
      %v692 = vsel %vm373, %v689, %v691
      %693 = vrot.lane.b32.xlu0 %v380, 80
      %v694 = vpop.permute.xlu0 %693
      %695 = vrot.lane.b32.xlu0 %v382, 80
      %v696 = vpop.permute.xlu0 %695
      %697 = vrot.lane.b32.xlu0 %v384, 80
      %v698 = vpop.permute.xlu0 %697
      %699 = vrot.lane.b32.xlu0 %v386, 80
      %v700 = vpop.permute.xlu0 %699
      %701 = vrot.lane.b32.xlu0 %v388, 80
      %v702 = vpop.permute.xlu0 %701
      %703 = vrot.lane.b32.xlu0 %v390, 80
      %v704 = vpop.permute.xlu0 %703
      %705 = vrot.lane.b32.xlu0 %v392, 80
      %v706 = vpop.permute.xlu0 %705
      %707 = vrot.lane.b32.xlu0 %v394, 80
      %v708 = vpop.permute.xlu0 %707
      %709 = vrot.lane.b32.xlu0 %v396, 80
      %v710 = vpop.permute.xlu0 %709
      %711 = vrot.lane.b32.xlu0 %v398, 80
      %v712 = vpop.permute.xlu0 %711
      %713 = vrot.lane.b32.xlu0 %v400, 80
      %v714 = vpop.permute.xlu0 %713
      %715 = vrot.lane.b32.xlu0 %v402, 80
      %v716 = vpop.permute.xlu0 %715
      %717 = vrot.lane.b32.xlu0 %v404, 80
      %v718 = vpop.permute.xlu0 %717
      %719 = vrot.lane.b32.xlu0 %v406, 80
      %v720 = vpop.permute.xlu0 %719
      %721 = vrot.lane.b32.xlu0 %v408, 80
      %v722 = vpop.permute.xlu0 %721
      %723 = vrot.lane.b32.xlu0 %v410, 80
      %v724 = vpop.permute.xlu0 %723
      %725 = vrot.lane.b32.xlu0 %v412, 80
      %v726 = vpop.permute.xlu0 %725
      %727 = vrot.lane.b32.xlu0 %v414, 80
      %v728 = vpop.permute.xlu0 %727
      %729 = vrot.lane.b32.xlu0 %v416, 80
      %v730 = vpop.permute.xlu0 %729
      %731 = vrot.lane.b32.xlu0 %v418, 80
      %v732 = vpop.permute.xlu0 %731
      %733 = vrot.lane.b32.xlu0 %v420, 80
      %v734 = vpop.permute.xlu0 %733
      %735 = vrot.lane.b32.xlu0 %v422, 80
      %v736 = vpop.permute.xlu0 %735
      %737 = vrot.lane.b32.xlu0 %v424, 80
      %v738 = vpop.permute.xlu0 %737
      %739 = vrot.lane.b32.xlu0 %v426, 80
      %v740 = vpop.permute.xlu0 %739
      %741 = vrot.lane.b32.xlu0 %v428, 80
      %v742 = vpop.permute.xlu0 %741
      %743 = vrot.lane.b32.xlu0 %v430, 80
      %v744 = vpop.permute.xlu0 %743
      %745 = vrot.lane.b32.xlu0 %v690, 80
      %v746 = vpop.permute.xlu0 %745
      %747 = vrot.lane.b32.xlu0 %v692, 80
      %v748 = vpop.permute.xlu0 %747
      %778 = vrot.lane.b32.xlu0 %v173, 96
      %v779 = vpop.permute.xlu0 %778
      %780 = vrot.lane.b32.xlu0 %v174, 96
      %v781 = vpop.permute.xlu0 %780
      %782 = vrot.lane.b32.xlu0 %v175, 96
      %v783 = vpop.permute.xlu0 %782
      %784 = vrot.lane.b32.xlu0 %v176, 96
      %v785 = vpop.permute.xlu0 %784
      %786 = vrot.lane.b32.xlu0 %v177, 96
      %v787 = vpop.permute.xlu0 %786
      %788 = vrot.lane.b32.xlu0 %v178, 96
      %v789 = vpop.permute.xlu0 %788
      %790 = vrot.lane.b32.xlu0 %v179, 96
      %v791 = vpop.permute.xlu0 %790
      %792 = vrot.lane.b32.xlu0 %v180, 96
      %v793 = vpop.permute.xlu0 %792
      %794 = vrot.lane.b32.xlu0 %v181, 96
      %v795 = vpop.permute.xlu0 %794
      %796 = vrot.lane.b32.xlu0 %v182, 96
      %v797 = vpop.permute.xlu0 %796
      %798 = vrot.lane.b32.xlu0 %v183, 96
      %v799 = vpop.permute.xlu0 %798
      %800 = vrot.lane.b32.xlu0 %v184, 96
      %v801 = vpop.permute.xlu0 %800
      %802 = vrot.lane.b32.xlu0 %v185, 96
      %v803 = vpop.permute.xlu0 %802
      %804 = vrot.lane.b32.xlu0 %v186, 96
      %v805 = vpop.permute.xlu0 %804
      %806 = vrot.lane.b32.xlu0 %v187, 96
      %v807 = vpop.permute.xlu0 %806
      %808 = vrot.lane.b32.xlu0 %v188, 96
      %v809 = vpop.permute.xlu0 %808
      %810 = vrot.lane.b32.xlu0 %v189, 96
      %v811 = vpop.permute.xlu0 %810
      %812 = vrot.lane.b32.xlu0 %v190, 96
      %v813 = vpop.permute.xlu0 %812
      %814 = vrot.lane.b32.xlu0 %v191, 96
      %v815 = vpop.permute.xlu0 %814
      %816 = vrot.lane.b32.xlu0 %v192, 96
      %v817 = vpop.permute.xlu0 %816
      %818 = vrot.lane.b32.xlu0 %v193, 96
      %v819 = vpop.permute.xlu0 %818
      %820 = vrot.lane.b32.xlu0 %v194, 96
      %v821 = vpop.permute.xlu0 %820
      %822 = vrot.lane.b32.xlu0 %v195, 96
      %v823 = vpop.permute.xlu0 %822
      %824 = vrot.lane.b32.xlu0 %v196, 96
      %v825 = vpop.permute.xlu0 %824
      %826 = vrot.lane.b32.xlu0 %v197, 96
      %v827 = vpop.permute.xlu0 %826
      %828 = vrot.lane.b32.xlu0 %v198, 96
      %v829 = vpop.permute.xlu0 %828
      %830 = vrot.lane.b32.xlu0 %v199, 96
      %v831 = vpop.permute.xlu0 %830
      %832 = vrot.lane.b32.xlu0 %v200, 96
      %v833 = vpop.permute.xlu0 %832
      %v863 = vrot.slane %v200, 1
      %v864 = vsel %vm231, %v603, %v863
      %v865 = vrot.slane %v201, 1
      %v866 = vsel %vm231, %v863, %v865
      %867 = vrot.lane.b32.xlu0 %v242, 112
      %v868 = vpop.permute.xlu0 %867
      %869 = vrot.lane.b32.xlu0 %v244, 112
      %v870 = vpop.permute.xlu0 %869
      %871 = vrot.lane.b32.xlu0 %v246, 112
      %v872 = vpop.permute.xlu0 %871
      %873 = vrot.lane.b32.xlu0 %v248, 112
      %v874 = vpop.permute.xlu0 %873
      %875 = vrot.lane.b32.xlu0 %v250, 112
      %v876 = vpop.permute.xlu0 %875
      %877 = vrot.lane.b32.xlu0 %v252, 112
      %v878 = vpop.permute.xlu0 %877
      %879 = vrot.lane.b32.xlu0 %v254, 112
      %v880 = vpop.permute.xlu0 %879
      %881 = vrot.lane.b32.xlu0 %v256, 112
      %v882 = vpop.permute.xlu0 %881
      %883 = vrot.lane.b32.xlu0 %v258, 112
      %v884 = vpop.permute.xlu0 %883
      %885 = vrot.lane.b32.xlu0 %v260, 112
      %v886 = vpop.permute.xlu0 %885
      %887 = vrot.lane.b32.xlu0 %v262, 112
      %v888 = vpop.permute.xlu0 %887
      %889 = vrot.lane.b32.xlu0 %v264, 112
      %v890 = vpop.permute.xlu0 %889
      %891 = vrot.lane.b32.xlu0 %v266, 112
      %v892 = vpop.permute.xlu0 %891
      %893 = vrot.lane.b32.xlu0 %v268, 112
      %v894 = vpop.permute.xlu0 %893
      %895 = vrot.lane.b32.xlu0 %v270, 112
      %v896 = vpop.permute.xlu0 %895
      %897 = vrot.lane.b32.xlu0 %v272, 112
      %v898 = vpop.permute.xlu0 %897
      %899 = vrot.lane.b32.xlu0 %v274, 112
      %v900 = vpop.permute.xlu0 %899
      %901 = vrot.lane.b32.xlu0 %v276, 112
      %v902 = vpop.permute.xlu0 %901
      %903 = vrot.lane.b32.xlu0 %v278, 112
      %v904 = vpop.permute.xlu0 %903
      %905 = vrot.lane.b32.xlu0 %v280, 112
      %v906 = vpop.permute.xlu0 %905
      %907 = vrot.lane.b32.xlu0 %v282, 112
      %v908 = vpop.permute.xlu0 %907
      %909 = vrot.lane.b32.xlu0 %v284, 112
      %v910 = vpop.permute.xlu0 %909
      %911 = vrot.lane.b32.xlu0 %v286, 112
      %v912 = vpop.permute.xlu0 %911
      %913 = vrot.lane.b32.xlu0 %v288, 112
      %v914 = vpop.permute.xlu0 %913
      %915 = vrot.lane.b32.xlu0 %v602, 112
      %v916 = vpop.permute.xlu0 %915
      %917 = vrot.lane.b32.xlu0 %v604, 112
      %v918 = vpop.permute.xlu0 %917
      %919 = vrot.lane.b32.xlu0 %v864, 112
      %v920 = vpop.permute.xlu0 %919
      %921 = vrot.lane.b32.xlu0 %v866, 112
      %v922 = vpop.permute.xlu0 %921
      %v951 = vrot.slane %v200, 2
      %v952 = vsel %vm373, %v691, %v951
      %v953 = vrot.slane %v201, 2
      %v954 = vsel %vm373, %v951, %v953
      %vm955 = vcmask 130048
      %v956 = vsel %vm955, %v169, %v290
      %v957 = vsel %vm955, %v170, %v292
      %v958 = vsel %vm955, %v171, %v294
      %v959 = vsel %vm955, %v172, %v296
      %v960 = vsel %vm955, %v173, %v298
      %v961 = vsel %vm955, %v174, %v300
      %v962 = vsel %vm955, %v175, %v302
      %v963 = vsel %vm955, %v176, %v304
      %v964 = vsel %vm955, %v177, %v306
      %v965 = vsel %vm955, %v178, %v308
      %v966 = vsel %vm955, %v179, %v310
      %v967 = vsel %vm955, %v180, %v312
      %v968 = vsel %vm955, %v181, %v314
      %v969 = vsel %vm955, %v182, %v316
      %v970 = vsel %vm955, %v183, %v318
      %v971 = vsel %vm955, %v184, %v320
      %v972 = vsel %vm955, %v185, %v322
      %v973 = vsel %vm955, %v186, %v324
      %v974 = vsel %vm955, %v187, %v326
      %v975 = vsel %vm955, %v188, %v328
      %v976 = vsel %vm955, %v189, %v330
      %v977 = vsel %vm955, %v190, %v332
      %v978 = vsel %vm955, %v191, %v334
      %v979 = vsel %vm955, %v192, %v336
      %v980 = vsel %vm955, %v193, %v338
      %v981 = vsel %vm955, %v194, %v340
      %v982 = vsel %vm955, %v195, %v342
      %v983 = vsel %vm955, %v196, %v344
      %vm984 = vcmask 261120
      %v985 = vsel %vm984, %v956, %v432
      %v986 = vsel %vm984, %v957, %v434
      %v987 = vsel %vm984, %v958, %v436
      %v988 = vsel %vm984, %v959, %v438
      %v989 = vsel %vm984, %v960, %v440
      %v990 = vsel %vm984, %v961, %v442
      %v991 = vsel %vm984, %v962, %v444
      %v992 = vsel %vm984, %v963, %v446
      %v993 = vsel %vm984, %v964, %v448
      %v994 = vsel %vm984, %v965, %v450
      %v995 = vsel %vm984, %v966, %v452
      %v996 = vsel %vm984, %v967, %v454
      %v997 = vsel %vm984, %v968, %v456
      %v998 = vsel %vm984, %v969, %v458
      %v999 = vsel %vm984, %v970, %v460
      %v1000 = vsel %vm984, %v971, %v462
      %v1001 = vsel %vm984, %v972, %v464
      %v1002 = vsel %vm984, %v973, %v466
      %v1003 = vsel %vm984, %v974, %v468
      %v1004 = vsel %vm984, %v975, %v470
      %v1005 = vsel %vm984, %v976, %v472
      %v1006 = vsel %vm984, %v977, %v474
      %v1007 = vsel %vm984, %v978, %v476
      %v1008 = vsel %vm984, %v979, %v478
      %v1009 = vsel %vm984, %v980, %v480
      %v1010 = vsel %vm984, %v981, %v482
      %v1011 = vsel %vm984, %v982, %v484
      %v1012 = vsel %vm984, %v983, %v486
      %vm1013 = vcmask 392192
      %v1014 = vsel %vm1013, %v985, %v517
      %v1015 = vsel %vm1013, %v986, %v519
      %v1016 = vsel %vm1013, %v987, %v521
      %v1017 = vsel %vm1013, %v988, %v523
      %v1018 = vsel %vm1013, %v989, %v525
      %v1019 = vsel %vm1013, %v990, %v527
      %v1020 = vsel %vm1013, %v991, %v529
      %v1021 = vsel %vm1013, %v992, %v531
      %v1022 = vsel %vm1013, %v993, %v533
      %v1023 = vsel %vm1013, %v994, %v535
      %v1024 = vsel %vm1013, %v995, %v537
      %v1025 = vsel %vm1013, %v996, %v539
      %v1026 = vsel %vm1013, %v997, %v541
      %v1027 = vsel %vm1013, %v998, %v543
      %v1028 = vsel %vm1013, %v999, %v545
      %v1029 = vsel %vm1013, %v1000, %v547
      %v1030 = vsel %vm1013, %v1001, %v549
      %v1031 = vsel %vm1013, %v1002, %v551
      %v1032 = vsel %vm1013, %v1003, %v553
      %v1033 = vsel %vm1013, %v1004, %v555
      %v1034 = vsel %vm1013, %v1005, %v557
      %v1035 = vsel %vm1013, %v1006, %v559
      %v1036 = vsel %vm1013, %v1007, %v561
      %v1037 = vsel %vm1013, %v1008, %v563
      %v1038 = vsel %vm1013, %v1009, %v565
      %v1039 = vsel %vm1013, %v1010, %v567
      %v1040 = vsel %vm1013, %v1011, %v569
      %v1041 = vsel %vm1013, %v1012, %v571
      %vm1042 = vcmask 523264
      %v1043 = vsel %vm1042, %v1014, %v606
      %v1044 = vsel %vm1042, %v1015, %v608
      %v1045 = vsel %vm1042, %v1016, %v610
      %v1046 = vsel %vm1042, %v1017, %v612
      %v1047 = vsel %vm1042, %v1018, %v614
      %v1048 = vsel %vm1042, %v1019, %v616
      %v1049 = vsel %vm1042, %v1020, %v618
      %v1050 = vsel %vm1042, %v1021, %v620
      %v1051 = vsel %vm1042, %v1022, %v622
      %v1052 = vsel %vm1042, %v1023, %v624
      %v1053 = vsel %vm1042, %v1024, %v626
      %v1054 = vsel %vm1042, %v1025, %v628
      %v1055 = vsel %vm1042, %v1026, %v630
      %v1056 = vsel %vm1042, %v1027, %v632
      %v1057 = vsel %vm1042, %v1028, %v634
      %v1058 = vsel %vm1042, %v1029, %v636
      %v1059 = vsel %vm1042, %v1030, %v638
      %v1060 = vsel %vm1042, %v1031, %v640
      %v1061 = vsel %vm1042, %v1032, %v642
      %v1062 = vsel %vm1042, %v1033, %v644
      %v1063 = vsel %vm1042, %v1034, %v646
      %v1064 = vsel %vm1042, %v1035, %v648
      %v1065 = vsel %vm1042, %v1036, %v650
      %v1066 = vsel %vm1042, %v1037, %v652
      %v1067 = vsel %vm1042, %v1038, %v654
      %v1068 = vsel %vm1042, %v1039, %v656
      %v1069 = vsel %vm1042, %v1040, %v658
      %v1070 = vsel %vm1042, %v1041, %v660
      %vm1071 = vcmask 654336
      %v1072 = vsel %vm1071, %v1043, %v694
      %v1073 = vsel %vm1071, %v1044, %v696
      %v1074 = vsel %vm1071, %v1045, %v698
      %v1075 = vsel %vm1071, %v1046, %v700
      %v1076 = vsel %vm1071, %v1047, %v702
      %v1077 = vsel %vm1071, %v1048, %v704
      %v1078 = vsel %vm1071, %v1049, %v706
      %v1079 = vsel %vm1071, %v1050, %v708
      %v1080 = vsel %vm1071, %v1051, %v710
      %v1081 = vsel %vm1071, %v1052, %v712
      %v1082 = vsel %vm1071, %v1053, %v714
      %v1083 = vsel %vm1071, %v1054, %v716
      %v1084 = vsel %vm1071, %v1055, %v718
      %v1085 = vsel %vm1071, %v1056, %v720
      %v1086 = vsel %vm1071, %v1057, %v722
      %v1087 = vsel %vm1071, %v1058, %v724
      %v1088 = vsel %vm1071, %v1059, %v726
      %v1089 = vsel %vm1071, %v1060, %v728
      %v1090 = vsel %vm1071, %v1061, %v730
      %v1091 = vsel %vm1071, %v1062, %v732
      %v1092 = vsel %vm1071, %v1063, %v734
      %v1093 = vsel %vm1071, %v1064, %v736
      %v1094 = vsel %vm1071, %v1065, %v738
      %v1095 = vsel %vm1071, %v1066, %v740
      %v1096 = vsel %vm1071, %v1067, %v742
      %v1097 = vsel %vm1071, %v1068, %v744
      %v1098 = vsel %vm1071, %v1069, %v746
      %v1099 = vsel %vm1071, %v1070, %v748
      %vm1100 = vcmask 785408
      %v1101 = vsel %vm1100, %v1072, %v779
      %v1102 = vsel %vm1100, %v1073, %v781
      %v1103 = vsel %vm1100, %v1074, %v783
      %v1104 = vsel %vm1100, %v1075, %v785
      %v1105 = vsel %vm1100, %v1076, %v787
      %v1106 = vsel %vm1100, %v1077, %v789
      %v1107 = vsel %vm1100, %v1078, %v791
      %v1108 = vsel %vm1100, %v1079, %v793
      %v1109 = vsel %vm1100, %v1080, %v795
      %v1110 = vsel %vm1100, %v1081, %v797
      %v1111 = vsel %vm1100, %v1082, %v799
      %v1112 = vsel %vm1100, %v1083, %v801
      %v1113 = vsel %vm1100, %v1084, %v803
      %v1114 = vsel %vm1100, %v1085, %v805
      %v1115 = vsel %vm1100, %v1086, %v807
      %v1116 = vsel %vm1100, %v1087, %v809
      %v1117 = vsel %vm1100, %v1088, %v811
      %v1118 = vsel %vm1100, %v1089, %v813
      %v1119 = vsel %vm1100, %v1090, %v815
      %v1120 = vsel %vm1100, %v1091, %v817
      %v1121 = vsel %vm1100, %v1092, %v819
      %v1122 = vsel %vm1100, %v1093, %v821
      %v1123 = vsel %vm1100, %v1094, %v823
      %v1124 = vsel %vm1100, %v1095, %v825
      %v1125 = vsel %vm1100, %v1096, %v827
      %v1126 = vsel %vm1100, %v1097, %v829
      %v1127 = vsel %vm1100, %v1098, %v831
      %v1128 = vsel %vm1100, %v1099, %v833
      %vm1129 = vcmask 916480
      %v1130 = vsel %vm1129, %v1101, %v868
      %v1131 = vsel %vm1129, %v1102, %v870
      %v1132 = vsel %vm1129, %v1103, %v872
      %v1133 = vsel %vm1129, %v1104, %v874
      %v1134 = vsel %vm1129, %v1105, %v876
      %v1135 = vsel %vm1129, %v1106, %v878
      %v1136 = vsel %vm1129, %v1107, %v880
      %v1137 = vsel %vm1129, %v1108, %v882
      %v1138 = vsel %vm1129, %v1109, %v884
      %v1139 = vsel %vm1129, %v1110, %v886
      %v1140 = vsel %vm1129, %v1111, %v888
      %v1141 = vsel %vm1129, %v1112, %v890
      %v1142 = vsel %vm1129, %v1113, %v892
      %v1143 = vsel %vm1129, %v1114, %v894
      %v1144 = vsel %vm1129, %v1115, %v896
      %v1145 = vsel %vm1129, %v1116, %v898
      %v1146 = vsel %vm1129, %v1117, %v900
      %v1147 = vsel %vm1129, %v1118, %v902
      %v1148 = vsel %vm1129, %v1119, %v904
      %v1149 = vsel %vm1129, %v1120, %v906
      %v1150 = vsel %vm1129, %v1121, %v908
      %v1151 = vsel %vm1129, %v1122, %v910
      %v1152 = vsel %vm1129, %v1123, %v912
      %v1153 = vsel %vm1129, %v1124, %v914
      %v1154 = vsel %vm1129, %v1125, %v916
      %v1155 = vsel %vm1129, %v1126, %v918
      %v1156 = vsel %vm1129, %v1127, %v920
      %v1157 = vsel %vm1129, %v1128, %v922
      %v1158 = vld [vmem:[%s1] sm:$0xff]
      %v1159 = vld [vmem:[%s1 + $0x8] sm:$0xff]
      %v1160 = vld [vmem:[%s1 + $0x10] sm:$0xff]
      %v1161 = vld [vmem:[%s1 + $0x18] sm:$0xff]
      %v1162 = vld [vmem:[%s1 + $0x20] sm:$0xff]
      %v1163 = vld [vmem:[%s1 + $0x28] sm:$0xff]
      %v1164 = vld [vmem:[%s1 + $0x30] sm:$0xff]
      %v1165 = vld [vmem:[%s1 + $0x38] sm:$0xff]
      %v1166 = vld [vmem:[%s1 + $0x40] sm:$0xff]
      %v1167 = vld [vmem:[%s1 + $0x48] sm:$0xff]
      %v1168 = vld [vmem:[%s1 + $0x50] sm:$0xff]
      %v1169 = vld [vmem:[%s1 + $0x58] sm:$0xff]
      %v1170 = vld [vmem:[%s1 + $0x60] sm:$0xff]
      %v1171 = vld [vmem:[%s1 + $0x68] sm:$0xff]
      %v1172 = vld [vmem:[%s1 + $0x70] sm:$0xff]
      %v1173 = vld [vmem:[%s1 + $0x78] sm:$0xff]
      %v1174 = vld [vmem:[%s1 + $0x80] sm:$0xff]
      %v1175 = vld [vmem:[%s1 + $0x88] sm:$0xff]
      %v1176 = vld [vmem:[%s2] sm:$0x1]
      %v1178 = vlaneseq
      %v1179 = vshrl.u32 %v1178, 7
      %v1180 = vsub.s32 0, %v1179
      %v1181 = vrot.slane %v1176, %v1180
      %v1183 = vsel %vm955, %v384, 0
      %v1185 = vsel %vm955, %v386, 0
      %v1187 = vsel %vm955, %v388, 0
      %v1189 = vsel %vm955, %v390, 0
      %v1191 = vsel %vm955, %v392, 0
      %v1193 = vsel %vm955, %v394, 0
      %v1195 = vsel %vm955, %v396, 0
      %v1197 = vsel %vm955, %v398, 0
      %v1199 = vsel %vm955, %v400, 0
      %v1201 = vsel %vm955, %v402, 0
      %v1203 = vsel %vm955, %v404, 0
      %v1205 = vsel %vm955, %v406, 0
      %v1207 = vsel %vm955, %v408, 0
      %v1209 = vsel %vm955, %v410, 0
      %v1211 = vsel %vm955, %v412, 0
      %v1213 = vsel %vm955, %v414, 0
      %v1215 = vsel %vm955, %v416, 0
      %v1217 = vsel %vm955, %v418, 0
      %v1219 = vsel %vm955, %v420, 0
      %v1221 = vsel %vm955, %v422, 0
      %v1223 = vsel %vm955, %v424, 0
      %v1225 = vsel %vm955, %v426, 0
      %v1227 = vsel %vm955, %v428, 0
      %v1229 = vsel %vm955, %v430, 0
      %v1231 = vsel %vm955, %v690, 0
      %v1233 = vsel %vm955, %v692, 0
      %v1235 = vsel %vm955, %v952, 0
      %v1237 = vsel %vm955, %v954, 0
      %1239 = vmatprep.subr.mxu0 0.0
      %1240 = vmatpush1.msra.mxu0 %v1158
      %1241 = vmatprep.subr.mxu0 0.0
      %1242 = vmatpush1.msra.mxu0 %v1159
      %1243 = vmatprep.subr.mxu0 0.0
      %1244 = vmatpush1.msra.mxu0 %v1160
      %1245 = vmatprep.subr.mxu0 0.0
      %1246 = vmatpush1.msra.mxu0 %v1161
      %1247 = vmatprep.subr.mxu0 0.0
      %1248 = vmatpush1.msra.mxu0 %v1162
      %1249 = vmatprep.subr.mxu0 0.0
      %1250 = vmatpush1.msra.mxu0 %v1163
      %1251 = vmatprep.subr.mxu0 0.0
      %1252 = vmatpush1.msra.mxu0 %v1164
      %1253 = vmatprep.subr.mxu0 0.0
      %1254 = vmatpush1.msra.mxu0 %v1165
      %1255 = vmatprep.subr.mxu0 0.0
      %1256 = vmatpush1.msra.mxu0 %v1166
      %1257 = vmatprep.subr.mxu0 0.0
      %1258 = vmatpush1.msra.mxu0 %v1167
      %1259 = vmatprep.subr.mxu0 0.0
      %1260 = vmatpush1.msra.mxu0 %v1168
      %1261 = vmatprep.subr.mxu0 0.0
      %1262 = vmatpush1.msra.mxu0 %v1169
      %1263 = vmatprep.subr.mxu0 0.0
      %1264 = vmatpush1.msra.mxu0 %v1170
      %1265 = vmatprep.subr.mxu0 0.0
      %1266 = vmatpush1.msra.mxu0 %v1171
      %1267 = vmatprep.subr.mxu0 0.0
      %1268 = vmatpush1.msra.mxu0 %v1172
      %1269 = vmatprep.subr.mxu0 0.0
      %1270 = vmatpush1.msra.mxu0 %v1173
      %1271 = vmatprep.subr.mxu0 0.0
      %1272 = vmatpush1.msra.mxu0 %v1174
      %1273 = vmatprep.subr.mxu0 0.0
      %1274 = vmatpush1.msra.mxu0 %v1175
      %1275 = vmatprep.subr.mxu0 0.0
      %1276 = vmatpush1.msra.mxu0 0.0
      %1277 = vmatprep.subr.mxu0 0.0
      %1278 = vmatpush1.msra.mxu0 0.0
      %1279 = vmatprep.subr.mxu0 0.0
      %1280 = vmatpush1.msra.mxu0 0.0
      %1281 = vmatprep.subr.mxu0 0.0
      %1282 = vmatpush1.msra.mxu0 0.0
      %1283 = vmatprep.subr.mxu0 0.0
      %1284 = vmatpush1.msra.mxu0 0.0
      %1285 = vmatprep.subr.mxu0 0.0
      %1286 = vmatpush1.msra.mxu0 0.0
      %1287 = vmatprep.subr.mxu0 0.0
      %1288 = vmatpush1.msra.mxu0 0.0
      %1289 = vmatprep.subr.mxu0 0.0
      %1290 = vmatpush1.msra.mxu0 0.0
      %1291 = vmatprep.subr.mxu0 0.0
      %1292 = vmatpush1.msra.mxu0 0.0
      %1293 = vmatprep.subr.mxu0 0.0
      %1294 = vmatpush1.msra.mxu0 0.0
      %1295 = vmatprep.subr.mxu0 0.0
      %1296 = vmatpush1.msra.mxu0 0.0
      %1297 = vmatprep.subr.mxu0 0.0
      %1298 = vmatpush1.msra.mxu0 0.0
      %1299 = vmatprep.subr.mxu0 0.0
      %1300 = vmatpush1.msra.mxu0 0.0
      %1301 = vmatprep.subr.mxu0 0.0
      %1302 = vmatpush1.msra.mxu0 0.0
      %1303 = vmatprep.mubr.f32.mxu0 %v1183
      %1304 = vmatmul.mubr.f32.gmra.mrb[0].mxu0 %v1130
      %v1305 = vpop.f32.mrb[0].mxu0
      %v1306 = vadd.f32 %v1181, %v1305
      %v1307 = vpop.f32.mrb[0].mxu0
      %1308 = vmatprep.mubr.f32.mxu0 %v1185
      %1309 = vmatmul.mubr.f32.gmra.mrb[0].mxu0 %v1131
      %v1310 = vpop.f32.mrb[0].mxu0
      %v1311 = vadd.f32 %v1181, %v1310
      %v1312 = vpop.f32.mrb[0].mxu0
      %1313 = vmatprep.mubr.f32.mxu0 %v1187
      %1314 = vmatmul.mubr.f32.gmra.mrb[0].mxu0 %v1132
      %v1315 = vpop.f32.mrb[0].mxu0
      %v1316 = vadd.f32 %v1181, %v1315
      %v1317 = vpop.f32.mrb[0].mxu0
      %1318 = vmatprep.mubr.f32.mxu0 %v1189
      %1319 = vmatmul.mubr.f32.gmra.mrb[0].mxu0 %v1133
      %v1320 = vpop.f32.mrb[0].mxu0
      %v1321 = vadd.f32 %v1181, %v1320
      %v1322 = vpop.f32.mrb[0].mxu0
      %1323 = vmatprep.mubr.f32.mxu0 %v1191
      %1324 = vmatmul.mubr.f32.gmra.mrb[0].mxu0 %v1134
      %v1325 = vpop.f32.mrb[0].mxu0
      %v1326 = vadd.f32 %v1181, %v1325
      %v1327 = vpop.f32.mrb[0].mxu0
      %1328 = vmatprep.mubr.f32.mxu0 %v1193
      %1329 = vmatmul.mubr.f32.gmra.mrb[0].mxu0 %v1135
      %v1330 = vpop.f32.mrb[0].mxu0
      %v1331 = vadd.f32 %v1181, %v1330
      %v1332 = vpop.f32.mrb[0].mxu0
      %1333 = vmatprep.mubr.f32.mxu0 %v1195
      %1334 = vmatmul.mubr.f32.gmra.mrb[0].mxu0 %v1136
      %v1335 = vpop.f32.mrb[0].mxu0
      %v1336 = vadd.f32 %v1181, %v1335
      %v1337 = vpop.f32.mrb[0].mxu0
      %1338 = vmatprep.mubr.f32.mxu0 %v1197
      %1339 = vmatmul.mubr.f32.gmra.mrb[0].mxu0 %v1137
      %v1340 = vpop.f32.mrb[0].mxu0
      %v1341 = vadd.f32 %v1181, %v1340
      %v1342 = vpop.f32.mrb[0].mxu0
      %1343 = vmatprep.mubr.f32.mxu0 %v1199
      %1344 = vmatmul.mubr.f32.gmra.mrb[0].mxu0 %v1138
      %v1345 = vpop.f32.mrb[0].mxu0
      %v1346 = vadd.f32 %v1181, %v1345
      %v1347 = vpop.f32.mrb[0].mxu0
      %1348 = vmatprep.mubr.f32.mxu0 %v1201
      %1349 = vmatmul.mubr.f32.gmra.mrb[0].mxu0 %v1139
      %v1350 = vpop.f32.mrb[0].mxu0
      %v1351 = vadd.f32 %v1181, %v1350
      %v1352 = vpop.f32.mrb[0].mxu0
      %1353 = vmatprep.mubr.f32.mxu0 %v1203
      %1354 = vmatmul.mubr.f32.gmra.mrb[0].mxu0 %v1140
      %v1355 = vpop.f32.mrb[0].mxu0
      %v1356 = vadd.f32 %v1181, %v1355
      %v1357 = vpop.f32.mrb[0].mxu0
      %1358 = vmatprep.mubr.f32.mxu0 %v1205
      %1359 = vmatmul.mubr.f32.gmra.mrb[0].mxu0 %v1141
      %v1360 = vpop.f32.mrb[0].mxu0
      %v1361 = vadd.f32 %v1181, %v1360
      %v1362 = vpop.f32.mrb[0].mxu0
      %1363 = vmatprep.mubr.f32.mxu0 %v1207
      %1364 = vmatmul.mubr.f32.gmra.mrb[0].mxu0 %v1142
      %v1365 = vpop.f32.mrb[0].mxu0
      %v1366 = vadd.f32 %v1181, %v1365
      %v1367 = vpop.f32.mrb[0].mxu0
      %1368 = vmatprep.mubr.f32.mxu0 %v1209
      %1369 = vmatmul.mubr.f32.gmra.mrb[0].mxu0 %v1143
      %v1370 = vpop.f32.mrb[0].mxu0
      %v1371 = vadd.f32 %v1181, %v1370
      %v1372 = vpop.f32.mrb[0].mxu0
      %1373 = vmatprep.mubr.f32.mxu0 %v1211
      %1374 = vmatmul.mubr.f32.gmra.mrb[0].mxu0 %v1144
      %v1375 = vpop.f32.mrb[0].mxu0
      %v1376 = vadd.f32 %v1181, %v1375
      %v1377 = vpop.f32.mrb[0].mxu0
      %1378 = vmatprep.mubr.f32.mxu0 %v1213
      %1379 = vmatmul.mubr.f32.gmra.mrb[0].mxu0 %v1145
      %v1380 = vpop.f32.mrb[0].mxu0
      %v1381 = vadd.f32 %v1181, %v1380
      %v1382 = vpop.f32.mrb[0].mxu0
      %1383 = vmatprep.mubr.f32.mxu0 %v1215
      %1384 = vmatmul.mubr.f32.gmra.mrb[0].mxu0 %v1146
      %v1385 = vpop.f32.mrb[0].mxu0
      %v1386 = vadd.f32 %v1181, %v1385
      %v1387 = vpop.f32.mrb[0].mxu0
      %1388 = vmatprep.mubr.f32.mxu0 %v1217
      %1389 = vmatmul.mubr.f32.gmra.mrb[0].mxu0 %v1147
      %v1390 = vpop.f32.mrb[0].mxu0
      %v1391 = vadd.f32 %v1181, %v1390
      %v1392 = vpop.f32.mrb[0].mxu0
      %1393 = vmatprep.mubr.f32.mxu0 %v1219
      %1394 = vmatmul.mubr.f32.gmra.mrb[0].mxu0 %v1148
      %v1395 = vpop.f32.mrb[0].mxu0
      %v1396 = vadd.f32 %v1181, %v1395
      %v1397 = vpop.f32.mrb[0].mxu0
      %1398 = vmatprep.mubr.f32.mxu0 %v1221
      %1399 = vmatmul.mubr.f32.gmra.mrb[0].mxu0 %v1149
      %v1400 = vpop.f32.mrb[0].mxu0
      %v1401 = vadd.f32 %v1181, %v1400
      %v1402 = vpop.f32.mrb[0].mxu0
      %1403 = vmatprep.mubr.f32.mxu0 %v1223
      %1404 = vmatmul.mubr.f32.gmra.mrb[0].mxu0 %v1150
      %v1405 = vpop.f32.mrb[0].mxu0
      %v1406 = vadd.f32 %v1181, %v1405
      %v1407 = vpop.f32.mrb[0].mxu0
      %1408 = vmatprep.mubr.f32.mxu0 %v1225
      %1409 = vmatmul.mubr.f32.gmra.mrb[0].mxu0 %v1151
      %v1410 = vpop.f32.mrb[0].mxu0
      %v1411 = vadd.f32 %v1181, %v1410
      %v1412 = vpop.f32.mrb[0].mxu0
      %1413 = vmatprep.mubr.f32.mxu0 %v1227
      %1414 = vmatmul.mubr.f32.gmra.mrb[0].mxu0 %v1152
      %v1415 = vpop.f32.mrb[0].mxu0
      %v1416 = vadd.f32 %v1181, %v1415
      %v1417 = vpop.f32.mrb[0].mxu0
      %1418 = vmatprep.mubr.f32.mxu0 %v1229
      %1419 = vmatmul.mubr.f32.gmra.mrb[0].mxu0 %v1153
      %v1420 = vpop.f32.mrb[0].mxu0
      %v1421 = vadd.f32 %v1181, %v1420
      %v1422 = vpop.f32.mrb[0].mxu0
      %1423 = vmatprep.mubr.f32.mxu0 %v1231
      %1424 = vmatmul.mubr.f32.gmra.mrb[0].mxu0 %v1154
      %v1425 = vpop.f32.mrb[0].mxu0
      %v1426 = vadd.f32 %v1181, %v1425
      %v1427 = vpop.f32.mrb[0].mxu0
      %1428 = vmatprep.mubr.f32.mxu0 %v1233
      %1429 = vmatmul.mubr.f32.gmra.mrb[0].mxu0 %v1155
      %v1430 = vpop.f32.mrb[0].mxu0
      %v1431 = vadd.f32 %v1181, %v1430
      %v1432 = vpop.f32.mrb[0].mxu0
      %1433 = vmatprep.mubr.f32.mxu0 %v1235
      %1434 = vmatmul.mubr.f32.gmra.mrb[0].mxu0 %v1156
      %v1435 = vpop.f32.mrb[0].mxu0
      %v1436 = vadd.f32 %v1181, %v1435
      %v1437 = vpop.f32.mrb[0].mxu0
      %1438 = vmatprep.mubr.f32.mxu0 %v1237
      %1439 = vmatmul.mubr.f32.gmra.mrb[0].mxu0 %v1157
      %v1440 = vpop.f32.mrb[0].mxu0
      %v1441 = vadd.f32 %v1181, %v1440
      %v1442 = vpop.f32.mrb[0].mxu0
      %1443 = vdwg.mxu0
      %v1444 = vadd.f32 %v1306, 0.0
      %v1445 = vadd.f32 %v1311, 0.0
      %v1446 = vadd.f32 %v1306, %v1316
      %v1447 = vadd.f32 %v1311, %v1321
      %v1448 = vadd.f32 %v1316, %v1326
      %v1449 = vadd.f32 %v1321, %v1331
      %v1450 = vadd.f32 %v1326, %v1336
      %v1451 = vadd.f32 %v1331, %v1341
      %v1452 = vadd.f32 %v1336, %v1346
      %v1453 = vadd.f32 %v1341, %v1351
      %v1454 = vadd.f32 %v1346, %v1356
      %v1455 = vadd.f32 %v1351, %v1361
      %v1456 = vadd.f32 %v1356, %v1366
      %v1457 = vadd.f32 %v1361, %v1371
      %v1458 = vadd.f32 %v1366, %v1376
      %v1459 = vadd.f32 %v1371, %v1381
      %v1460 = vadd.f32 %v1376, %v1386
      %v1461 = vadd.f32 %v1381, %v1391
      %v1462 = vadd.f32 %v1386, %v1396
      %v1463 = vadd.f32 %v1391, %v1401
      %v1464 = vadd.f32 %v1396, %v1406
      %v1465 = vadd.f32 %v1401, %v1411
      %v1466 = vadd.f32 %v1406, %v1416
      %v1467 = vadd.f32 %v1411, %v1421
      %v1468 = vadd.f32 %v1416, %v1426
      %v1469 = vadd.f32 %v1421, %v1431
      %v1470 = vadd.f32 %v1444, %v1316
      %v1471 = vadd.f32 %v1445, %v1321
      %v1472 = vadd.f32 %v1446, %v1326
      %v1473 = vadd.f32 %v1447, %v1331
      %v1474 = vadd.f32 %v1448, %v1336
      %v1475 = vadd.f32 %v1449, %v1341
      %v1476 = vadd.f32 %v1450, %v1346
      %v1477 = vadd.f32 %v1451, %v1351
      %v1478 = vadd.f32 %v1452, %v1356
      %v1479 = vadd.f32 %v1453, %v1361
      %v1480 = vadd.f32 %v1454, %v1366
      %v1481 = vadd.f32 %v1455, %v1371
      %v1482 = vadd.f32 %v1456, %v1376
      %v1483 = vadd.f32 %v1457, %v1381
      %v1484 = vadd.f32 %v1458, %v1386
      %v1485 = vadd.f32 %v1459, %v1391
      %v1486 = vadd.f32 %v1460, %v1396
      %v1487 = vadd.f32 %v1461, %v1401
      %v1488 = vadd.f32 %v1462, %v1406
      %v1489 = vadd.f32 %v1463, %v1411
      %v1490 = vadd.f32 %v1464, %v1416
      %v1491 = vadd.f32 %v1465, %v1421
      %v1492 = vadd.f32 %v1466, %v1426
      %v1493 = vadd.f32 %v1467, %v1431
      %v1494 = vadd.f32 %v1468, %v1436
      %v1495 = vadd.f32 %v1469, %v1441
      %vm1522 = vcmask 1040384
      %v1523 = vrot.slane %v1470, 7
      %v1524 = vrot.slane %v1471, 7
      %v1525 = vsel %vm1522, %v1523, %v1524
      %v1526 = vrot.slane %v1472, 7
      %v1527 = vrot.slane %v1473, 7
      %v1528 = vsel %vm1522, %v1526, %v1527
      %v1529 = vrot.slane %v1474, 7
      %v1530 = vrot.slane %v1475, 7
      %v1531 = vsel %vm1522, %v1529, %v1530
      %v1532 = vrot.slane %v1476, 7
      %v1533 = vrot.slane %v1477, 7
      %v1534 = vsel %vm1522, %v1532, %v1533
      %v1535 = vrot.slane %v1478, 7
      %v1536 = vrot.slane %v1479, 7
      %v1537 = vsel %vm1522, %v1535, %v1536
      %v1538 = vrot.slane %v1480, 7
      %v1539 = vrot.slane %v1481, 7
      %v1540 = vsel %vm1522, %v1538, %v1539
      %v1541 = vrot.slane %v1482, 7
      %v1542 = vrot.slane %v1483, 7
      %v1543 = vsel %vm1522, %v1541, %v1542
      %v1544 = vrot.slane %v1484, 7
      %v1545 = vrot.slane %v1485, 7
      %v1546 = vsel %vm1522, %v1544, %v1545
      %v1547 = vrot.slane %v1486, 7
      %v1548 = vrot.slane %v1487, 7
      %v1549 = vsel %vm1522, %v1547, %v1548
      %v1550 = vrot.slane %v1488, 7
      %v1551 = vrot.slane %v1489, 7
      %v1552 = vsel %vm1522, %v1550, %v1551
      %v1553 = vrot.slane %v1490, 7
      %v1554 = vrot.slane %v1491, 7
      %v1555 = vsel %vm1522, %v1553, %v1554
      %v1556 = vrot.slane %v1492, 7
      %v1557 = vrot.slane %v1493, 7
      %v1558 = vsel %vm1522, %v1556, %v1557
      %v1559 = vrot.slane %v1494, 7
      %v1560 = vrot.slane %v1495, 7
      %v1561 = vsel %vm1522, %v1559, %v1560
      %v1588 = vsel %vm1522, 0.0, %v1523
      %v1589 = vsel %vm1522, 0.0, %v1526
      %v1590 = vsel %vm1522, 0.0, %v1529
      %v1591 = vsel %vm1522, 0.0, %v1532
      %v1592 = vsel %vm1522, 0.0, %v1535
      %v1593 = vsel %vm1522, 0.0, %v1538
      %v1594 = vsel %vm1522, 0.0, %v1541
      %v1595 = vsel %vm1522, 0.0, %v1544
      %v1596 = vsel %vm1522, 0.0, %v1547
      %v1597 = vsel %vm1522, 0.0, %v1550
      %v1598 = vsel %vm1522, 0.0, %v1553
      %v1599 = vsel %vm1522, 0.0, %v1556
      %v1600 = vsel %vm1522, 0.0, %v1559
      %v1601 = vrot.slane %v1470, 1
      %v1602 = vrot.slane %v1471, 1
      %v1603 = vsel %vm231, %v1601, %v1602
      %v1604 = vrot.slane %v1472, 1
      %v1605 = vrot.slane %v1473, 1
      %v1606 = vsel %vm231, %v1604, %v1605
      %v1607 = vrot.slane %v1474, 1
      %v1608 = vrot.slane %v1475, 1
      %v1609 = vsel %vm231, %v1607, %v1608
      %v1610 = vrot.slane %v1476, 1
      %v1611 = vrot.slane %v1477, 1
      %v1612 = vsel %vm231, %v1610, %v1611
      %v1613 = vrot.slane %v1478, 1
      %v1614 = vrot.slane %v1479, 1
      %v1615 = vsel %vm231, %v1613, %v1614
      %v1616 = vrot.slane %v1480, 1
      %v1617 = vrot.slane %v1481, 1
      %v1618 = vsel %vm231, %v1616, %v1617
      %v1619 = vrot.slane %v1482, 1
      %v1620 = vrot.slane %v1483, 1
      %v1621 = vsel %vm231, %v1619, %v1620
      %v1622 = vrot.slane %v1484, 1
      %v1623 = vrot.slane %v1485, 1
      %v1624 = vsel %vm231, %v1622, %v1623
      %v1625 = vrot.slane %v1486, 1
      %v1626 = vrot.slane %v1487, 1
      %v1627 = vsel %vm231, %v1625, %v1626
      %v1628 = vrot.slane %v1488, 1
      %v1629 = vrot.slane %v1489, 1
      %v1630 = vsel %vm231, %v1628, %v1629
      %v1631 = vrot.slane %v1490, 1
      %v1632 = vrot.slane %v1491, 1
      %v1633 = vsel %vm231, %v1631, %v1632
      %v1634 = vrot.slane %v1492, 1
      %v1635 = vrot.slane %v1493, 1
      %v1636 = vsel %vm231, %v1634, %v1635
      %v1637 = vrot.slane %v1494, 1
      %v1638 = vrot.slane %v1495, 1
      %v1639 = vsel %vm231, %v1637, %v1638
      %vm1666 = vcmask 1044480
      %v1667 = vsel %vm1666, %v1602, 0.0
      %v1668 = vsel %vm1666, %v1605, 0.0
      %v1669 = vsel %vm1666, %v1608, 0.0
      %v1670 = vsel %vm1666, %v1611, 0.0
      %v1671 = vsel %vm1666, %v1614, 0.0
      %v1672 = vsel %vm1666, %v1617, 0.0
      %v1673 = vsel %vm1666, %v1620, 0.0
      %v1674 = vsel %vm1666, %v1623, 0.0
      %v1675 = vsel %vm1666, %v1626, 0.0
      %v1676 = vsel %vm1666, %v1629, 0.0
      %v1677 = vsel %vm1666, %v1632, 0.0
      %v1678 = vsel %vm1666, %v1635, 0.0
      %v1679 = vsel %vm1666, %v1638, 0.0
      %v1680 = vadd.f32 %v1588, %v1470
      %v1681 = vadd.f32 %v1525, %v1471
      %v1682 = vadd.f32 %v1589, %v1472
      %v1683 = vadd.f32 %v1528, %v1473
      %v1684 = vadd.f32 %v1590, %v1474
      %v1685 = vadd.f32 %v1531, %v1475
      %v1686 = vadd.f32 %v1591, %v1476
      %v1687 = vadd.f32 %v1534, %v1477
      %v1688 = vadd.f32 %v1592, %v1478
      %v1689 = vadd.f32 %v1537, %v1479
      %v1690 = vadd.f32 %v1593, %v1480
      %v1691 = vadd.f32 %v1540, %v1481
      %v1692 = vadd.f32 %v1594, %v1482
      %v1693 = vadd.f32 %v1543, %v1483
      %v1694 = vadd.f32 %v1595, %v1484
      %v1695 = vadd.f32 %v1546, %v1485
      %v1696 = vadd.f32 %v1596, %v1486
      %v1697 = vadd.f32 %v1549, %v1487
      %v1698 = vadd.f32 %v1597, %v1488
      %v1699 = vadd.f32 %v1552, %v1489
      %v1700 = vadd.f32 %v1598, %v1490
      %v1701 = vadd.f32 %v1555, %v1491
      %v1702 = vadd.f32 %v1599, %v1492
      %v1703 = vadd.f32 %v1558, %v1493
      %v1704 = vadd.f32 %v1600, %v1494
      %v1705 = vadd.f32 %v1561, %v1495
      %v1706 = vadd.f32 %v1680, %v1603
      %v1707 = vadd.f32 %v1681, %v1667
      %v1708 = vadd.f32 %v1682, %v1606
      %v1709 = vadd.f32 %v1683, %v1668
      %v1710 = vadd.f32 %v1684, %v1609
      %v1711 = vadd.f32 %v1685, %v1669
      %v1712 = vadd.f32 %v1686, %v1612
      %v1713 = vadd.f32 %v1687, %v1670
      %v1714 = vadd.f32 %v1688, %v1615
      %v1715 = vadd.f32 %v1689, %v1671
      %v1716 = vadd.f32 %v1690, %v1618
      %v1717 = vadd.f32 %v1691, %v1672
      %v1718 = vadd.f32 %v1692, %v1621
      %v1719 = vadd.f32 %v1693, %v1673
      %v1720 = vadd.f32 %v1694, %v1624
      %v1721 = vadd.f32 %v1695, %v1674
      %v1722 = vadd.f32 %v1696, %v1627
      %v1723 = vadd.f32 %v1697, %v1675
      %v1724 = vadd.f32 %v1698, %v1630
      %v1725 = vadd.f32 %v1699, %v1676
      %v1726 = vadd.f32 %v1700, %v1633
      %v1727 = vadd.f32 %v1701, %v1677
      %v1728 = vadd.f32 %v1702, %v1636
      %v1729 = vadd.f32 %v1703, %v1678
      %v1730 = vadd.f32 %v1704, %v1639
      %v1731 = vadd.f32 %v1705, %v1679
      %v1732 = vadd.f32 %v1706, %v1708
      %v1733 = vadd.f32 %v1707, %v1709
      %v1734 = vadd.f32 %v1710, %v1712
      %v1735 = vadd.f32 %v1711, %v1713
      %v1736 = vadd.f32 %v1714, %v1716
      %v1737 = vadd.f32 %v1715, %v1717
      %v1738 = vadd.f32 %v1718, %v1720
      %v1739 = vadd.f32 %v1719, %v1721
      %v1740 = vadd.f32 %v1722, %v1724
      %v1741 = vadd.f32 %v1723, %v1725
      %v1742 = vadd.f32 %v1726, %v1728
      %v1743 = vadd.f32 %v1727, %v1729
      %v1744 = vadd.f32 %v1732, %v1710
      %v1745 = vadd.f32 %v1733, %v1711
      %v1746 = vadd.f32 %v1734, %v1714
      %v1747 = vadd.f32 %v1735, %v1715
      %v1748 = vadd.f32 %v1736, %v1718
      %v1749 = vadd.f32 %v1737, %v1719
      %v1750 = vadd.f32 %v1738, %v1722
      %v1751 = vadd.f32 %v1739, %v1723
      %v1752 = vadd.f32 %v1740, %v1726
      %v1753 = vadd.f32 %v1741, %v1727
      %v1754 = vadd.f32 %v1742, %v1730
      %v1755 = vadd.f32 %v1743, %v1731
      %v1768 = vrot.slane %v1744, 1
      %v1769 = vrot.slane %v1745, 1
      %v1770 = vsel %vm231, %v1768, %v1769
      %v1771 = vrot.slane %v1746, 1
      %v1772 = vrot.slane %v1747, 1
      %v1773 = vsel %vm231, %v1771, %v1772
      %v1774 = vrot.slane %v1748, 1
      %v1775 = vrot.slane %v1749, 1
      %v1776 = vsel %vm231, %v1774, %v1775
      %v1777 = vrot.slane %v1750, 1
      %v1778 = vrot.slane %v1751, 1
      %v1779 = vsel %vm231, %v1777, %v1778
      %v1780 = vrot.slane %v1752, 1
      %v1781 = vrot.slane %v1753, 1
      %v1782 = vsel %vm231, %v1780, %v1781
      %v1783 = vrot.slane %v1754, 1
      %v1784 = vrot.slane %v1755, 1
      %v1785 = vsel %vm231, %v1783, %v1784
      %v1798 = vadd.f32 %v1744, %v1770
      %v1799 = vadd.f32 %v1745, %v1769
      %v1800 = vadd.f32 %v1746, %v1773
      %v1801 = vadd.f32 %v1747, %v1772
      %v1802 = vadd.f32 %v1748, %v1776
      %v1803 = vadd.f32 %v1749, %v1775
      %v1804 = vadd.f32 %v1750, %v1779
      %v1805 = vadd.f32 %v1751, %v1778
      %v1806 = vadd.f32 %v1752, %v1782
      %v1807 = vadd.f32 %v1753, %v1781
      %v1808 = vadd.f32 %v1754, %v1785
      %v1809 = vadd.f32 %v1755, %v1784
      %v1810 = vrot.slane %v1744, 2
      %v1811 = vrot.slane %v1745, 2
      %v1812 = vsel %vm373, %v1810, %v1811
      %v1813 = vrot.slane %v1746, 2
      %v1814 = vrot.slane %v1747, 2
      %v1815 = vsel %vm373, %v1813, %v1814
      %v1816 = vrot.slane %v1748, 2
      %v1817 = vrot.slane %v1749, 2
      %v1818 = vsel %vm373, %v1816, %v1817
      %v1819 = vrot.slane %v1750, 2
      %v1820 = vrot.slane %v1751, 2
      %v1821 = vsel %vm373, %v1819, %v1820
      %v1822 = vrot.slane %v1752, 2
      %v1823 = vrot.slane %v1753, 2
      %v1824 = vsel %vm373, %v1822, %v1823
      %v1825 = vrot.slane %v1754, 2
      %v1826 = vrot.slane %v1755, 2
      %v1827 = vsel %vm373, %v1825, %v1826
      %v1840 = vadd.f32 %v1798, %v1812
      %v1841 = vadd.f32 %v1799, %v1811
      %v1842 = vadd.f32 %v1800, %v1815
      %v1843 = vadd.f32 %v1801, %v1814
      %v1844 = vadd.f32 %v1802, %v1818
      %v1845 = vadd.f32 %v1803, %v1817
      %v1846 = vadd.f32 %v1804, %v1821
      %v1847 = vadd.f32 %v1805, %v1820
      %v1848 = vadd.f32 %v1806, %v1824
      %v1849 = vadd.f32 %v1807, %v1823
      %v1850 = vadd.f32 %v1808, %v1827
      %v1851 = vadd.f32 %v1809, %v1826
      %v1858 = vrot.slane %v1842, 7
      %vm1859 = vcmask 1041409
      %v1860 = vsel %vm1859, %v1858, %v1840
      %v1861 = vrot.slane %v1844, 6
      %vm1862 = vcmask 1042434
      %v1863 = vsel %vm1862, %v1861, %v1860
      %v1864 = vrot.slane %v1846, 5
      %vm1865 = vcmask 1043459
      %v1866 = vsel %vm1865, %v1864, %v1863
      %v1867 = vrot.slane %v1848, 4
      %vm1868 = vcmask 1044484
      %v1869 = vsel %vm1868, %v1867, %v1866
      %v1870 = vrot.slane %v1850, 3
      %vm1871 = vcmask 1045509
      %v1872 = vsel %vm1871, %v1870, %v1869
      %v1874 = vrot.slane %v1840, 2
      %v1875 = vrot.slane %v1842, 1
      %v1876 = vsel %vm1859, %v1875, %v1874
      %v1877 = vsel %vm1862, %v1844, %v1876
      %v1878 = vrot.slane %v1846, 7
      %v1879 = vsel %vm1865, %v1878, %v1877
      %v1880 = vrot.slane %v1848, 6
      %v1881 = vsel %vm1868, %v1880, %v1879
      %v1882 = vrot.slane %v1850, 5
      %v1883 = vsel %vm1871, %v1882, %v1881
      %1884 = vrot.lane.b32.xlu0 %v1883, 16
      %v1885 = vpop.permute.xlu0 %1884
      %v1887 = vrot.slane %v1840, 4
      %v1888 = vrot.slane %v1842, 3
      %v1889 = vsel %vm1859, %v1888, %v1887
      %v1890 = vrot.slane %v1844, 2
      %v1891 = vsel %vm1862, %v1890, %v1889
      %v1892 = vrot.slane %v1846, 1
      %v1893 = vsel %vm1865, %v1892, %v1891
      %v1894 = vsel %vm1868, %v1848, %v1893
      %v1895 = vrot.slane %v1850, 7
      %v1896 = vsel %vm1871, %v1895, %v1894
      %1897 = vrot.lane.b32.xlu0 %v1896, 32
      %v1898 = vpop.permute.xlu0 %1897
      %v1900 = vrot.slane %v1840, 6
      %v1901 = vrot.slane %v1842, 5
      %v1902 = vsel %vm1859, %v1901, %v1900
      %v1903 = vrot.slane %v1844, 4
      %v1904 = vsel %vm1862, %v1903, %v1902
      %v1905 = vrot.slane %v1846, 3
      %v1906 = vsel %vm1865, %v1905, %v1904
      %v1907 = vrot.slane %v1848, 2
      %v1908 = vsel %vm1868, %v1907, %v1906
      %v1909 = vrot.slane %v1850, 1
      %v1910 = vsel %vm1871, %v1909, %v1908
      %1911 = vrot.lane.b32.xlu0 %v1910, 48
      %v1912 = vpop.permute.xlu0 %1911
      %v1920 = vrot.slane %v1843, 7
      %v1921 = vsel %vm1859, %v1920, %v1841
      %v1922 = vrot.slane %v1845, 6
      %v1923 = vsel %vm1862, %v1922, %v1921
      %v1924 = vrot.slane %v1847, 5
      %v1925 = vsel %vm1865, %v1924, %v1923
      %v1926 = vrot.slane %v1849, 4
      %v1927 = vsel %vm1868, %v1926, %v1925
      %v1928 = vrot.slane %v1851, 3
      %v1929 = vsel %vm1871, %v1928, %v1927
      %1930 = vrot.lane.b32.xlu0 %v1929, 64
      %v1931 = vpop.permute.xlu0 %1930
      %v1933 = vrot.slane %v1841, 2
      %v1934 = vrot.slane %v1843, 1
      %v1935 = vsel %vm1859, %v1934, %v1933
      %v1936 = vsel %vm1862, %v1845, %v1935
      %v1937 = vrot.slane %v1847, 7
      %v1938 = vsel %vm1865, %v1937, %v1936
      %v1939 = vrot.slane %v1849, 6
      %v1940 = vsel %vm1868, %v1939, %v1938
      %v1941 = vrot.slane %v1851, 5
      %v1942 = vsel %vm1871, %v1941, %v1940
      %1943 = vrot.lane.b32.xlu0 %v1942, 80
      %v1944 = vpop.permute.xlu0 %1943
      %v1946 = vsel %vm955, %v1872, %v1885
      %v1947 = vsel %vm984, %v1946, %v1898
      %v1948 = vsel %vm1013, %v1947, %v1912
      %v1949 = vsel %vm1042, %v1948, %v1931
      %v1950 = vsel %vm1071, %v1949, %v1944
      %v1951 = vmul.f32 %v1950, 0.11111111
      %vm1952 = vcmask 783360
      %1953 = vst.msk [vmem:[%s168] sm:$0x3f] %vm1952, %v1951
      %p1954 = scmp.lt.s32.totalorder %s14, 1
      %s1955 = scalar_select %p1954, %s14, 1
      %s1956 = smul.addr %s1955, 8
      %s1957 = scalar_lea.vmem %s3, %s1956
      // Predicated region
      $region33: #{tpu_custom_call.1} parent=31 // pred_check
        %p1958 = pneg %p100
      $region34: #{tpu_custom_call.1} parent=31 // pred_check_branch
        %1960 = sbr.rel (%p1958) target = $region36
      $region35: #{tpu_custom_call.1} parent=31 // pred_region
        _
      $region36: #{tpu_custom_call.1} parent=31 // pred_fallthru
        _
    $region32: #{tpu_custom_call.1} parent=5 // pred_fallthru
      _
    %p1961 = scmp.le.s32.totalorder 2, %s9
    // Predicated region
    $region37: #{tpu_custom_call.1} parent=5 // pred_check
      %p1962 = pneg %p1961
    $region38: #{tpu_custom_call.1} parent=5 // pred_check_branch
      %1964 = sbr.rel (%p1962) target = $region40
    $region39: #{tpu_custom_call.1} parent=5 // pred_region
      %s1965 = ssub.s32 %s9, 2
      // Predicated region
      $region41: #{tpu_custom_call.1} parent=39 // pred_check
        %p1966 = pneg %p106
      $region42: #{tpu_custom_call.1} parent=39 // pred_check_branch
        %1968 = sbr.rel (%p1966) target = $region44
      $region43: #{tpu_custom_call.1} parent=39 // pred_region
        %p1969 = scmp.lt.s32.totalorder %s15, 1
        %s1970 = scalar_select %p1969, %s15, 1
        %s1971 = smul.addr %s1970, 8
        %s1972 = scalar_lea.vmem %s3, %s1971
      $region44: #{tpu_custom_call.1} parent=39 // pred_fallthru
        _
    $region40: #{tpu_custom_call.1} parent=5 // pred_fallthru
      _
  $region6: #{tpu_custom_call.1} parent=0 // loop_footer
    %s13 = sadd.s32 1, %s9
  $region7: #{tpu_custom_call.1} parent=0 // loop_footer_branch
    %8 = sbr.rel target = $region3
  $region8: #{tpu_custom_call.1} parent=0 // loop_exit
    _

</llo_original>
